<compile_context>
chip_gen: v5e
topology: v5e:2x2
jax: 0.10.0
libtpu: 0.0.40
codegen_flags: <defaults>
</compile_context>

<pallas_src>
import functools
import math

import numpy as np
import jax
import jax.numpy as jnp
from jax import lax
from jax.experimental import pallas as pl
from jax.experimental.pallas import tpu as pltpu

# Set to jnp.bfloat16 on v6e/v7x for 2-4x MXU throughput (accumulation stays
# f32 via preferred_element_type; LN / softmax stats are always f32).  Kept
# f32 by default for parity with the PyTorch reference.
MATMUL_DTYPE = jnp.float32

LANE = 128


def _round_up(x, m):
    return (x + m - 1) // m * m


def _vmem_limit_bytes():
    """Generation-aware VMEM budget (v7x has 64 MiB physical, v5e/v6e 128)."""
    kind = ""
    try:
        kind = jax.devices()[0].device_kind.lower()
    except Exception:  # e.g. interpret mode on CPU
        pass
    if "7" in kind:
        return 40 * 1024 * 1024
    if "v5" in kind or "v6" in kind:
        return 64 * 1024 * 1024
    return 32 * 1024 * 1024


def _mm(a, b):
    return jnp.dot(a.astype(MATMUL_DTYPE), b.astype(MATMUL_DTYPE),
                   preferred_element_type=jnp.float32)


def _layernorm_padded(y, g, b, d_real, eps=1e-5):
    """LayerNorm over the first `d_real` lanes of a zero-lane-padded tensor."""
    dp = y.shape[-1]
    if d_real == dp:
        mean = jnp.mean(y, axis=-1, keepdims=True)
        c = y - mean
        var = jnp.mean(c * c, axis=-1, keepdims=True)
        return c * lax.rsqrt(var + eps) * g + b
    inv_d = 1.0 / d_real
    mask = (lax.broadcasted_iota(jnp.int32, (1, dp), 1) < d_real).astype(jnp.float32)
    mean = jnp.sum(y * mask, axis=-1, keepdims=True) * inv_d
    c = (y - mean) * mask
    var = jnp.sum(c * c, axis=-1, keepdims=True) * inv_d
    # gamma/beta are zero in the padded lanes -> output stays zero-padded.
    return c * lax.rsqrt(var + eps) * g + b


# ----------------------------------------------------------------------------
# Fused whole-model kernel.  grid = (B, L); activations live in `act_ref`
# (VMEM scratch) across the L axis; classifier epilogue on the last layer.
# ----------------------------------------------------------------------------
def _fused_model_kernel(x_ref,
                        wqkv_ref, bqkv_ref, wo_ref, bo_ref,
                        ln1_g_ref, ln1_b_ref,
                        w1_ref, b1_ref, w2_ref, b2_ref,
                        ln2_g_ref, ln2_b_ref,
                        cw1_ref, cb1_ref, cw2_ref, cb2_ref, cw3_ref, cb3_ref,
                        logits_ref,
                        act_ref,
                        *, num_heads, d_real):
    li = pl.program_id(1)
    last = pl.num_programs(1) - 1

    # First layer: load this batch row's activations into the resident slab.
    @pl.when(li == 0)
    def _():
        act_ref[...] = x_ref[0].astype(jnp.float32)

    x = act_ref[...]                                   # (S, Dp) f32, zero-padded
    s_len, dp = x.shape
    hdp = dp // num_heads
    scale = 1.0 / math.sqrt(d_real // num_heads)       # real head_dim scaling

    # ---- fused QKV projection: single (S, Dp) @ (Dp, 3Dp) MXU pass ----
    qkv = _mm(x, wqkv_ref[0]) + bqkv_ref[0]            # (S, 3Dp)
    q = qkv[:, :dp] * scale                            # fold 1/sqrt(hd) into q
    k = qkv[:, dp:2 * dp]
    v = qkv[:, 2 * dp:]

    # ---- attention with the out-projection folded into the head loop ----
    # Head outputs never leave vregs; no attn scratch, no masked partial vst.
    # NOTE: if num_heads or S grows, switch this static unroll to lax.fori_loop
    # to bound vreg live ranges.
    wo = wo_ref[0]
    attn = jnp.zeros((s_len, dp), jnp.float32)
    for h in range(num_heads):
        lo, hi = h * hdp, (h + 1) * hdp
        qh, kh, vh = q[:, lo:hi], k[:, lo:hi], v[:, lo:hi]
        s = lax.dot_general(qh.astype(MATMUL_DTYPE), kh.astype(MATMUL_DTYPE),
                            dimension_numbers=(((1,), (1,)), ((), ())),
                            preferred_element_type=jnp.float32)   # (S, S)
        s = s - jnp.max(s, axis=-1, keepdims=True)
        p = jnp.exp(s)
        p = p * pl.reciprocal(jnp.sum(p, axis=-1, keepdims=True), approx=True)
        attn = attn + _mm(_mm(p, vh), wo[lo:hi, :])
    attn = attn + bo_ref[0]

    # ---- post-norm block 1: LN1(x + attn) ----
    h1 = _layernorm_padded(x + attn, ln1_g_ref[0], ln1_b_ref[0], d_real)

    # ---- FFN: relu(h @ W1 + b1) @ W2 + b2, then LN2(h + ffn) ----
    f = jnp.maximum(_mm(h1, w1_ref[0]) + b1_ref[0], 0.0)
    f = _mm(f, w2_ref[0]) + b2_ref[0]
    out = _layernorm_padded(h1 + f, ln2_g_ref[0], ln2_b_ref[0], d_real)
    act_ref[...] = out

    # ---- last layer only: mean-pool over S + fused MLP classifier ----
    @pl.when(li == last)
    def _():
        pooled = jnp.mean(out, axis=0, keepdims=True)              # (1, Dp)
        c1 = jnp.maximum(_mm(pooled, cw1_ref[...]) + cb1_ref[...], 0.0)
        c2 = jnp.maximum(_mm(c1, cw2_ref[...]) + cb2_ref[...], 0.0)
        logits = _mm(c2, cw3_ref[...]) + cb3_ref[...]              # (1, Cp)
        logits_ref[0] = logits.astype(logits_ref.dtype)


def vanilla_transformer_forward(packed, x, *, num_heads, d_model, num_classes):
    """x: (B, S, C_in) -> logits (B, num_classes).  One pallas_call total."""
    # Mirror `if self.input_dim != x.shape[-1]: x = x[:, :, :self.input_dim]`
    # (d_model is a static Python int here, not a tracer).
    if x.shape[-1] != d_model:
        x = x[:, :, :d_model]
    B, S, _ = x.shape

    L = packed["wqkv"].shape[0]
    assert L >= 1, "num_layers must be >= 1"
    dp = packed["wqkv"].shape[1]
    fp = packed["w1"].shape[2]
    h1p = packed["cw1"].shape[1]
    h2p = packed["cw2"].shape[1]
    cp = packed["cw3"].shape[1]

    x_p = jnp.pad(x.astype(jnp.float32), ((0, 0), (0, 0), (0, dp - d_model)))

    def lw(shape):   # stacked per-layer weight, new block per layer index
        return pl.BlockSpec((1,) + shape, lambda b, l: (l, 0, 0))

    def cw(shape):   # classifier weight: grid-invariant block
        return pl.BlockSpec(shape, lambda b, l: (0, 0))

    kernel = functools.partial(_fused_model_kernel, num_heads=num_heads,
                               d_real=d_model)

    logits_p = pl.pallas_call(
        kernel,
        out_shape=jax.ShapeDtypeStruct((B, 1, cp), jnp.float32),
        grid=(B, L),
        in_specs=[
            pl.BlockSpec((1, S, dp), lambda b, l: (b, 0, 0)),      # x
            lw((dp, 3 * dp)), lw((1, 3 * dp)),                     # wqkv, bqkv
            lw((dp, dp)), lw((1, dp)),                             # wo, bo
            lw((1, dp)), lw((1, dp)),                              # ln1 g/b
            lw((dp, fp)), lw((1, fp)),                             # ffn1 w/b
            lw((fp, dp)), lw((1, dp)),                             # ffn2 w/b
            lw((1, dp)), lw((1, dp)),                              # ln2 g/b
            cw((dp, h1p)), cw((1, h1p)),                           # cls layer 1
            cw((h1p, h2p)), cw((1, h2p)),                          # cls layer 2
            cw((h2p, cp)), cw((1, cp)),                            # cls layer 3
        ],
        out_specs=pl.BlockSpec((1, 1, cp), lambda b, l: (b, 0, 0)),
        scratch_shapes=[pltpu.VMEM((S, dp), jnp.float32)],         # resident acts
        compiler_params=pltpu.CompilerParams(
            dimension_semantics=("parallel", "arbitrary"),
            vmem_limit_bytes=_vmem_limit_bytes()),
    )(x_p,
      packed["wqkv"], packed["bqkv"], packed["wo"], packed["bo"],
      packed["ln1_g"], packed["ln1_b"],
      packed["w1"], packed["b1"], packed["w2"], packed["b2"],
      packed["ln2_g"], packed["ln2_b"],
      packed["cw1"], packed["cb1"], packed["cw2"], packed["cb2"],
      packed["cw3"], packed["cb3"])

    return logits_p[:, 0, :num_classes]                # drop lane padding (host)


# ----------------------------------------------------------------------------
# Logical (unpadded) parameters + host-side packing to lane-padded layout
# ----------------------------------------------------------------------------
def init_logical_params(key, input_dim, ffn_embed_dim, num_layers, num_heads,
                        num_classes):
    D = input_dim // num_heads * num_heads
    F = ffn_embed_dim

    def w(k, shape, scale=0.02):
        return scale * jax.random.normal(k, shape, dtype=jnp.float32)

    layers = []
    for _ in range(num_layers):
        key, *ks = jax.random.split(key, 13)
        layers.append(dict(
            wqkv=w(ks[0], (D, 3 * D)), bqkv=w(ks[1], (3 * D,)),
            wo=w(ks[2], (D, D)), bo=w(ks[3], (D,)),
            ln1_g=1.0 + w(ks[4], (D,), 0.1), ln1_b=w(ks[5], (D,), 0.1),
            w1=w(ks[6], (D, F)), b1=w(ks[7], (F,)),
            w2=w(ks[8], (F, D)), b2=w(ks[9], (D,)),
            ln2_g=1.0 + w(ks[10], (D,), 0.1), ln2_b=w(ks[11], (D,), 0.1),
        ))
    key, k1, k2, k3, k4, k5, k6 = jax.random.split(key, 7)
    cls = dict(
        w1=w(k1, (D, D // 2)), b1=w(k2, (D // 2,)),
        w2=w(k3, (D // 2, D // 4)), b2=w(k4, (D // 4,)),
        w3=w(k5, (D // 4, num_classes)), b3=w(k6, (num_classes,)),
    )
    return dict(layers=layers, cls=cls)


def pack_params(logical, num_heads):
    """Zero-pad all dims to 128 lanes; per-head scatter for QKV cols / Wo rows."""
    layers, cls = logical["layers"], logical["cls"]
    D = cls["w1"].shape[0]
    F = layers[0]["w1"].shape[1]
    H = num_heads
    hd = D // H

    Dp = _round_up(D, LANE)
    if Dp % H != 0:
        Dp = H * _round_up(hd, LANE)
    hdp = Dp // H
    Fp = _round_up(F, LANE)
    H1, H2, C = cls["w1"].shape[1], cls["w2"].shape[1], cls["w3"].shape[1]
    H1p, H2p, Cp = _round_up(H1, LANE), _round_up(H2, LANE), _round_up(C, LANE)

    def pad2(w, r, c):
        out = np.zeros((r, c), np.float32)
        out[:w.shape[0], :w.shape[1]] = np.asarray(w)
        return out

    def pad1(v, c):
        out = np.zeros((c,), np.float32)
        out[:v.shape[0]] = np.asarray(v)
        return out

    keys = ("wqkv", "bqkv", "wo", "bo", "ln1_g", "ln1_b",
            "w1", "b1", "w2", "b2", "ln2_g", "ln2_b")
    stacks = {k: [] for k in keys}

    for lp in layers:
        wqkv = np.asarray(lp["wqkv"]); bqkv = np.asarray(lp["bqkv"])
        wqkv_p = np.zeros((Dp, 3 * Dp), np.float32)
        bqkv_p = np.zeros((3 * Dp,), np.float32)
        for part in range(3):                      # q, k, v
            for h in range(H):                     # per-head column scatter
                src = slice(part * D + h * hd, part * D + (h + 1) * hd)
                dst = slice(part * Dp + h * hdp, part * Dp + h * hdp + hd)
                wqkv_p[:D, dst] = wqkv[:, src]
                bqkv_p[dst] = bqkv[src]
        wo = np.asarray(lp["wo"])
        wo_p = np.zeros((Dp, Dp), np.float32)
        for h in range(H):                         # per-head row scatter
            wo_p[h * hdp:h * hdp + hd, :D] = wo[h * hd:(h + 1) * hd, :]

        stacks["wqkv"].append(wqkv_p)
        stacks["bqkv"].append(bqkv_p.reshape(1, 3 * Dp))
        stacks["wo"].append(wo_p)
        stacks["bo"].append(pad1(lp["bo"], Dp).reshape(1, Dp))
        stacks["ln1_g"].append(pad1(lp["ln1_g"], Dp).reshape(1, Dp))
        stacks["ln1_b"].append(pad1(lp["ln1_b"], Dp).reshape(1, Dp))
        stacks["w1"].append(pad2(lp["w1"], Dp, Fp))
        stacks["b1"].append(pad1(lp["b1"], Fp).reshape(1, Fp))
        stacks["w2"].append(pad2(lp["w2"], Fp, Dp))
        stacks["b2"].append(pad1(lp["b2"], Dp).reshape(1, Dp))
        stacks["ln2_g"].append(pad1(lp["ln2_g"], Dp).reshape(1, Dp))
        stacks["ln2_b"].append(pad1(lp["ln2_b"], Dp).reshape(1, Dp))

    packed = {k: jnp.asarray(np.stack(v, axis=0)) for k, v in stacks.items()}
    packed.update(
        cw1=jnp.asarray(pad2(cls["w1"], Dp, H1p)),
        cb1=jnp.asarray(pad1(cls["b1"], H1p).reshape(1, H1p)),
        cw2=jnp.asarray(pad2(cls["w2"], H1p, H2p)),
        cb2=jnp.asarray(pad1(cls["b2"], H2p).reshape(1, H2p)),
        cw3=jnp.asarray(pad2(cls["w3"], H2p, Cp)),
        cb3=jnp.asarray(pad1(cls["b3"], Cp).reshape(1, Cp)),
    )
    return packed


# ----------------------------------------------------------------------------
# Pure-JAX reference (unpadded) for correctness validation
# ----------------------------------------------------------------------------
def _ref_ln(y, g, b, eps=1e-5):
    mean = jnp.mean(y, -1, keepdims=True)
    var = jnp.mean(jnp.square(y - mean), -1, keepdims=True)
    return (y - mean) / jnp.sqrt(var + eps) * g + b


def reference_forward(logical, x, num_heads, d_model):
    if x.shape[-1] != d_model:
        x = x[..., :d_model]
    B, S, D = x.shape
    H, hd = num_heads, D // num_heads
    h = x.astype(jnp.float32)
    for lp in logical["layers"]:
        qkv = h @ lp["wqkv"] + lp["bqkv"]
        q, k, v = qkv[..., :D], qkv[..., D:2 * D], qkv[..., 2 * D:]
        q = q.reshape(B, S, H, hd).transpose(0, 2, 1, 3) / math.sqrt(hd)
        k = k.reshape(B, S, H, hd).transpose(0, 2, 1, 3)
        v = v.reshape(B, S, H, hd).transpose(0, 2, 1, 3)
        p = jax.nn.softmax(jnp.einsum("bhqd,bhkd->bhqk", q, k), axis=-1)
        o = jnp.einsum("bhqk,bhkd->bhqd", p, v).transpose(0, 2, 1, 3).reshape(B, S, D)
        o = o @ lp["wo"] + lp["bo"]
        h = _ref_ln(h + o, lp["ln1_g"], lp["ln1_b"])
        f = jax.nn.relu(h @ lp["w1"] + lp["b1"]) @ lp["w2"] + lp["b2"]
        h = _ref_ln(h + f, lp["ln2_g"], lp["ln2_b"])
    pooled = jnp.mean(h, axis=1)
    c = logical["cls"]
    z = jax.nn.relu(pooled @ c["w1"] + c["b1"])
    z = jax.nn.relu(z @ c["w2"] + c["b2"])
    return z @ c["w3"] + c["b3"]


# ----------------------------------------------------------------------------
if __name__ == "__main__":
    input_dim = 34        # -> effective D = 34 // 4 * 4 = 32 (slice path exercised)
    ffn_embed_dim = 64
    num_layers = 2
    num_heads = 4
    num_classes = 10
    B, S = 2, 8
    D = input_dim // num_heads * num_heads

    key = jax.random.PRNGKey(0)
    key, pkey, xkey = jax.random.split(key, 3)
    logical = init_logical_params(pkey, input_dim, ffn_embed_dim, num_layers,
                                  num_heads, num_classes)
    packed = pack_params(logical, num_heads)
    x = jax.random.normal(xkey, (B, S, input_dim), dtype=jnp.float32)

    fwd = jax.jit(functools.partial(vanilla_transformer_forward,
                                    num_heads=num_heads, d_model=D,
                                    num_classes=num_classes))
    out = jax.block_until_ready(fwd(packed, x))

    assert out.shape == (B, num_classes)
    assert bool(jnp.all(jnp.isfinite(out)))

    ref = jax.block_until_ready(reference_forward(logical, x, num_heads, D))
    np.testing.assert_allclose(np.asarray(out), np.asarray(ref),
                               rtol=2e-2, atol=1e-4)

    print("KERNEL_OK")
</pallas_src>

<mosaic_0001>
module attributes {stable_mosaic.version = 11 : i64} {
  func.func @_fused_model_kernel(%arg0: i32, %arg1: i32, %arg2: memref<1x8x128xf32, #tpu.memory_space<vmem>>, %arg3: memref<1x128x384xf32, #tpu.memory_space<vmem>>, %arg4: memref<1x1x384xf32, #tpu.memory_space<vmem>>, %arg5: memref<1x128x128xf32, #tpu.memory_space<vmem>>, %arg6: memref<1x1x128xf32, #tpu.memory_space<vmem>>, %arg7: memref<1x1x128xf32, #tpu.memory_space<vmem>>, %arg8: memref<1x1x128xf32, #tpu.memory_space<vmem>>, %arg9: memref<1x128x128xf32, #tpu.memory_space<vmem>>, %arg10: memref<1x1x128xf32, #tpu.memory_space<vmem>>, %arg11: memref<1x128x128xf32, #tpu.memory_space<vmem>>, %arg12: memref<1x1x128xf32, #tpu.memory_space<vmem>>, %arg13: memref<1x1x128xf32, #tpu.memory_space<vmem>>, %arg14: memref<1x1x128xf32, #tpu.memory_space<vmem>>, %arg15: memref<128x128xf32, #tpu.memory_space<vmem>>, %arg16: memref<1x128xf32, #tpu.memory_space<vmem>>, %arg17: memref<128x128xf32, #tpu.memory_space<vmem>>, %arg18: memref<1x128xf32, #tpu.memory_space<vmem>>, %arg19: memref<128x128xf32, #tpu.memory_space<vmem>>, %arg20: memref<1x128xf32, #tpu.memory_space<vmem>>, %arg21: memref<1x1x128xf32, #tpu.memory_space<vmem>>, %arg22: memref<8x128xf32, #tpu.memory_space<vmem>>) attributes {dimension_semantics = [#tpu.dimension_semantics<parallel>, #tpu.dimension_semantics<arbitrary>], iteration_bounds = array<i64: 2, 2>, scalar_prefetch = 0 : i64, scratch_operands = 1 : i64, tpu.core_type = #tpu.core_type<tc>, window_params = [{transform_indices = @transform_0, window_bounds = array<i64: 1, 8, 128>}, {transform_indices = @transform_1, window_bounds = array<i64: 1, 128, 384>}, {transform_indices = @transform_2, window_bounds = array<i64: 1, 1, 384>}, {transform_indices = @transform_3, window_bounds = array<i64: 1, 128, 128>}, {transform_indices = @transform_4, window_bounds = array<i64: 1, 1, 128>}, {transform_indices = @transform_5, window_bounds = array<i64: 1, 1, 128>}, {transform_indices = @transform_6, window_bounds = array<i64: 1, 1, 128>}, {transform_indices = @transform_7, window_bounds = array<i64: 1, 128, 128>}, {transform_indices = @transform_8, window_bounds = array<i64: 1, 1, 128>}, {transform_indices = @transform_9, window_bounds = array<i64: 1, 128, 128>}, {transform_indices = @transform_10, window_bounds = array<i64: 1, 1, 128>}, {transform_indices = @transform_11, window_bounds = array<i64: 1, 1, 128>}, {transform_indices = @transform_12, window_bounds = array<i64: 1, 1, 128>}, {pipeline_mode = #tpu.pipeline_mode<synchronous>, transform_indices = @transform_13, window_bounds = array<i64: 128, 128>}, {pipeline_mode = #tpu.pipeline_mode<synchronous>, transform_indices = @transform_14, window_bounds = array<i64: 1, 128>}, {pipeline_mode = #tpu.pipeline_mode<synchronous>, transform_indices = @transform_15, window_bounds = array<i64: 128, 128>}, {pipeline_mode = #tpu.pipeline_mode<synchronous>, transform_indices = @transform_16, window_bounds = array<i64: 1, 128>}, {pipeline_mode = #tpu.pipeline_mode<synchronous>, transform_indices = @transform_17, window_bounds = array<i64: 128, 128>}, {pipeline_mode = #tpu.pipeline_mode<synchronous>, transform_indices = @transform_18, window_bounds = array<i64: 1, 128>}, {transform_indices = @transform_19, window_bounds = array<i64: 1, 1, 128>}]} {
    %c0_i32 = arith.constant 0 : i32
    %0 = arith.cmpi eq, %arg1, %c0_i32 : i32
    %1 = arith.extui %0 : i1 to i32
    %c0_i32_0 = arith.constant 0 : i32
    %2 = arith.cmpi ne, %1, %c0_i32_0 : i32
    scf.if %2 {
      %c0_77 = arith.constant 0 : index
      %c0_78 = arith.constant 0 : index
      %c0_79 = arith.constant 0 : index
      %183 = vector.load %arg2[%c0_77, %c0_78, %c0_79] : memref<1x8x128xf32, #tpu.memory_space<vmem>>, vector<1x8x128xf32>
      %184 = vector.shape_cast %183 : vector<1x8x128xf32> to vector<8x128xf32>
      %c0_80 = arith.constant 0 : index
      %c0_81 = arith.constant 0 : index
      %185 = vector.load %arg22[%c0_80, %c0_81] : memref<8x128xf32, #tpu.memory_space<vmem>>, vector<8x128xf32>
      tpu.vector_store %arg22[%c0_80, %c0_81], %184 {strides = array<i32>} : memref<8x128xf32, #tpu.memory_space<vmem>>, vector<8x128xf32>,
    } else {
    }
    %c0 = arith.constant 0 : index
    %c0_1 = arith.constant 0 : index
    %3 = vector.load %arg22[%c0, %c0_1] : memref<8x128xf32, #tpu.memory_space<vmem>>, vector<8x128xf32>
    %c0_2 = arith.constant 0 : index
    %c0_3 = arith.constant 0 : index
    %c0_4 = arith.constant 0 : index
    %4 = vector.load %arg3[%c0_2, %c0_3, %c0_4] : memref<1x128x384xf32, #tpu.memory_space<vmem>>, vector<1x128x384xf32>
    %5 = vector.shape_cast %4 : vector<1x128x384xf32> to vector<128x384xf32>
    %cst = arith.constant dense<0.000000e+00> : vector<8x384xf32>
    %6 = tpu.matmul %3, %5, %cst {dimension_numbers = #tpu.dot_dimension_numbers<[1], [0], [0], [1], [0, 0, 1, 1], [], []>} : vector<8x128xf32>, vector<128x384xf32>, vector<8x384xf32> -> vector<8x384xf32>
    %c0_5 = arith.constant 0 : index
    %c0_6 = arith.constant 0 : index
    %c0_7 = arith.constant 0 : index
    %7 = vector.load %arg4[%c0_5, %c0_6, %c0_7] : memref<1x1x384xf32, #tpu.memory_space<vmem>>, vector<1x1x384xf32>
    %8 = vector.shape_cast %7 : vector<1x1x384xf32> to vector<1x384xf32>
    %9 = vector.broadcast %8 : vector<1x384xf32> to vector<8x384xf32>
    %10 = arith.addf %6, %9 : vector<8x384xf32>
    %11 = vector.extract_strided_slice %10 {offsets = [0, 0], sizes = [8, 128], strides = [1, 1]} : vector<8x384xf32> to vector<8x128xf32>
    %cst_8 = arith.constant 0.353553385 : f32
    %12 = vector.broadcast %cst_8 : f32 to vector<8x128xf32>
    %13 = arith.mulf %11, %12 : vector<8x128xf32>
    %14 = vector.extract_strided_slice %10 {offsets = [0, 128], sizes = [8, 128], strides = [1, 1]} : vector<8x384xf32> to vector<8x128xf32>
    %15 = vector.extract_strided_slice %10 {offsets = [0, 256], sizes = [8, 128], strides = [1, 1]} : vector<8x384xf32> to vector<8x128xf32>
    %c0_9 = arith.constant 0 : index
    %c0_10 = arith.constant 0 : index
    %c0_11 = arith.constant 0 : index
    %16 = vector.load %arg5[%c0_9, %c0_10, %c0_11] : memref<1x128x128xf32, #tpu.memory_space<vmem>>, vector<1x128x128xf32>
    %17 = vector.shape_cast %16 : vector<1x128x128xf32> to vector<128x128xf32>
    %cst_12 = arith.constant 0.000000e+00 : f32
    %18 = vector.broadcast %cst_12 : f32 to vector<8x128xf32>
    %19 = vector.extract_strided_slice %13 {offsets = [0, 0], sizes = [8, 32], strides = [1, 1]} : vector<8x128xf32> to vector<8x32xf32>
    %20 = vector.extract_strided_slice %14 {offsets = [0, 0], sizes = [8, 32], strides = [1, 1]} : vector<8x128xf32> to vector<8x32xf32>
    %21 = vector.extract_strided_slice %15 {offsets = [0, 0], sizes = [8, 32], strides = [1, 1]} : vector<8x128xf32> to vector<8x32xf32>
    %cst_13 = arith.constant dense<0.000000e+00> : vector<8x8xf32>
    %22 = tpu.matmul %19, %20, %cst_13 {dimension_numbers = #tpu.dot_dimension_numbers<[1], [1], [0], [0], [0, 0, 1, 0], [], []>} : vector<8x32xf32>, vector<8x32xf32>, vector<8x8xf32> -> vector<8x8xf32>
    %cst_14 = arith.constant dense<0xFF800000> : vector<8xf32>
    %23 = vector.multi_reduction <maximumf>, %22, %cst_14 [1] : vector<8x8xf32> to vector<8xf32>
    %24 = vector.shape_cast %23 : vector<8xf32> to vector<8x1xf32>
    %25 = vector.broadcast %24 : vector<8x1xf32> to vector<8x8xf32>
    %26 = arith.subf %22, %25 : vector<8x8xf32>
    %27 = math.exp %26 : vector<8x8xf32>
    %cst_15 = arith.constant dense<0.000000e+00> : vector<8xf32>
    %28 = vector.multi_reduction <add>, %27, %cst_15 [1] : vector<8x8xf32> to vector<8xf32>
    %29 = vector.shape_cast %28 : vector<8xf32> to vector<8x1xf32>
    %30 = tpu.reciprocal %29 {approx = true} : vector<8x1xf32> -> vector<8x1xf32>
    %31 = vector.broadcast %30 : vector<8x1xf32> to vector<8x8xf32>
    %32 = arith.mulf %27, %31 : vector<8x8xf32>
    %cst_16 = arith.constant dense<0.000000e+00> : vector<8x32xf32>
    %33 = tpu.matmul %32, %21, %cst_16 {dimension_numbers = #tpu.dot_dimension_numbers<[1], [0], [0], [1], [0, 0, 1, 1], [], []>} : vector<8x8xf32>, vector<8x32xf32>, vector<8x32xf32> -> vector<8x32xf32>
    %34 = vector.extract_strided_slice %17 {offsets = [0, 0], sizes = [32, 128], strides = [1, 1]} : vector<128x128xf32> to vector<32x128xf32>
    %cst_17 = arith.constant dense<0.000000e+00> : vector<8x128xf32>
    %35 = tpu.matmul %33, %34, %cst_17 {dimension_numbers = #tpu.dot_dimension_numbers<[1], [0], [0], [1], [0, 0, 1, 1], [], []>} : vector<8x32xf32>, vector<32x128xf32>, vector<8x128xf32> -> vector<8x128xf32>
    %36 = arith.addf %18, %35 : vector<8x128xf32>
    %37 = vector.extract_strided_slice %13 {offsets = [0, 32], sizes = [8, 32], strides = [1, 1]} : vector<8x128xf32> to vector<8x32xf32>
    %38 = vector.extract_strided_slice %14 {offsets = [0, 32], sizes = [8, 32], strides = [1, 1]} : vector<8x128xf32> to vector<8x32xf32>
    %39 = vector.extract_strided_slice %15 {offsets = [0, 32], sizes = [8, 32], strides = [1, 1]} : vector<8x128xf32> to vector<8x32xf32>
    %cst_18 = arith.constant dense<0.000000e+00> : vector<8x8xf32>
    %40 = tpu.matmul %37, %38, %cst_18 {dimension_numbers = #tpu.dot_dimension_numbers<[1], [1], [0], [0], [0, 0, 1, 0], [], []>} : vector<8x32xf32>, vector<8x32xf32>, vector<8x8xf32> -> vector<8x8xf32>
    %cst_19 = arith.constant dense<0xFF800000> : vector<8xf32>
    %41 = vector.multi_reduction <maximumf>, %40, %cst_19 [1] : vector<8x8xf32> to vector<8xf32>
    %42 = vector.shape_cast %41 : vector<8xf32> to vector<8x1xf32>
    %43 = vector.broadcast %42 : vector<8x1xf32> to vector<8x8xf32>
    %44 = arith.subf %40, %43 : vector<8x8xf32>
    %45 = math.exp %44 : vector<8x8xf32>
    %cst_20 = arith.constant dense<0.000000e+00> : vector<8xf32>
    %46 = vector.multi_reduction <add>, %45, %cst_20 [1] : vector<8x8xf32> to vector<8xf32>
    %47 = vector.shape_cast %46 : vector<8xf32> to vector<8x1xf32>
    %48 = tpu.reciprocal %47 {approx = true} : vector<8x1xf32> -> vector<8x1xf32>
    %49 = vector.broadcast %48 : vector<8x1xf32> to vector<8x8xf32>
    %50 = arith.mulf %45, %49 : vector<8x8xf32>
    %cst_21 = arith.constant dense<0.000000e+00> : vector<8x32xf32>
    %51 = tpu.matmul %50, %39, %cst_21 {dimension_numbers = #tpu.dot_dimension_numbers<[1], [0], [0], [1], [0, 0, 1, 1], [], []>} : vector<8x8xf32>, vector<8x32xf32>, vector<8x32xf32> -> vector<8x32xf32>
    %52 = vector.extract_strided_slice %17 {offsets = [32, 0], sizes = [32, 128], strides = [1, 1]} : vector<128x128xf32> to vector<32x128xf32>
    %cst_22 = arith.constant dense<0.000000e+00> : vector<8x128xf32>
    %53 = tpu.matmul %51, %52, %cst_22 {dimension_numbers = #tpu.dot_dimension_numbers<[1], [0], [0], [1], [0, 0, 1, 1], [], []>} : vector<8x32xf32>, vector<32x128xf32>, vector<8x128xf32> -> vector<8x128xf32>
    %54 = arith.addf %36, %53 : vector<8x128xf32>
    %55 = vector.extract_strided_slice %13 {offsets = [0, 64], sizes = [8, 32], strides = [1, 1]} : vector<8x128xf32> to vector<8x32xf32>
    %56 = vector.extract_strided_slice %14 {offsets = [0, 64], sizes = [8, 32], strides = [1, 1]} : vector<8x128xf32> to vector<8x32xf32>
    %57 = vector.extract_strided_slice %15 {offsets = [0, 64], sizes = [8, 32], strides = [1, 1]} : vector<8x128xf32> to vector<8x32xf32>
    %cst_23 = arith.constant dense<0.000000e+00> : vector<8x8xf32>
    %58 = tpu.matmul %55, %56, %cst_23 {dimension_numbers = #tpu.dot_dimension_numbers<[1], [1], [0], [0], [0, 0, 1, 0], [], []>} : vector<8x32xf32>, vector<8x32xf32>, vector<8x8xf32> -> vector<8x8xf32>
    %cst_24 = arith.constant dense<0xFF800000> : vector<8xf32>
    %59 = vector.multi_reduction <maximumf>, %58, %cst_24 [1] : vector<8x8xf32> to vector<8xf32>
    %60 = vector.shape_cast %59 : vector<8xf32> to vector<8x1xf32>
    %61 = vector.broadcast %60 : vector<8x1xf32> to vector<8x8xf32>
    %62 = arith.subf %58, %61 : vector<8x8xf32>
    %63 = math.exp %62 : vector<8x8xf32>
    %cst_25 = arith.constant dense<0.000000e+00> : vector<8xf32>
    %64 = vector.multi_reduction <add>, %63, %cst_25 [1] : vector<8x8xf32> to vector<8xf32>
    %65 = vector.shape_cast %64 : vector<8xf32> to vector<8x1xf32>
    %66 = tpu.reciprocal %65 {approx = true} : vector<8x1xf32> -> vector<8x1xf32>
    %67 = vector.broadcast %66 : vector<8x1xf32> to vector<8x8xf32>
    %68 = arith.mulf %63, %67 : vector<8x8xf32>
    %cst_26 = arith.constant dense<0.000000e+00> : vector<8x32xf32>
    %69 = tpu.matmul %68, %57, %cst_26 {dimension_numbers = #tpu.dot_dimension_numbers<[1], [0], [0], [1], [0, 0, 1, 1], [], []>} : vector<8x8xf32>, vector<8x32xf32>, vector<8x32xf32> -> vector<8x32xf32>
    %70 = vector.extract_strided_slice %17 {offsets = [64, 0], sizes = [32, 128], strides = [1, 1]} : vector<128x128xf32> to vector<32x128xf32>
    %cst_27 = arith.constant dense<0.000000e+00> : vector<8x128xf32>
    %71 = tpu.matmul %69, %70, %cst_27 {dimension_numbers = #tpu.dot_dimension_numbers<[1], [0], [0], [1], [0, 0, 1, 1], [], []>} : vector<8x32xf32>, vector<32x128xf32>, vector<8x128xf32> -> vector<8x128xf32>
    %72 = arith.addf %54, %71 : vector<8x128xf32>
    %73 = vector.extract_strided_slice %13 {offsets = [0, 96], sizes = [8, 32], strides = [1, 1]} : vector<8x128xf32> to vector<8x32xf32>
    %74 = vector.extract_strided_slice %14 {offsets = [0, 96], sizes = [8, 32], strides = [1, 1]} : vector<8x128xf32> to vector<8x32xf32>
    %75 = vector.extract_strided_slice %15 {offsets = [0, 96], sizes = [8, 32], strides = [1, 1]} : vector<8x128xf32> to vector<8x32xf32>
    %cst_28 = arith.constant dense<0.000000e+00> : vector<8x8xf32>
    %76 = tpu.matmul %73, %74, %cst_28 {dimension_numbers = #tpu.dot_dimension_numbers<[1], [1], [0], [0], [0, 0, 1, 0], [], []>} : vector<8x32xf32>, vector<8x32xf32>, vector<8x8xf32> -> vector<8x8xf32>
    %cst_29 = arith.constant dense<0xFF800000> : vector<8xf32>
    %77 = vector.multi_reduction <maximumf>, %76, %cst_29 [1] : vector<8x8xf32> to vector<8xf32>
    %78 = vector.shape_cast %77 : vector<8xf32> to vector<8x1xf32>
    %79 = vector.broadcast %78 : vector<8x1xf32> to vector<8x8xf32>
    %80 = arith.subf %76, %79 : vector<8x8xf32>
    %81 = math.exp %80 : vector<8x8xf32>
    %cst_30 = arith.constant dense<0.000000e+00> : vector<8xf32>
    %82 = vector.multi_reduction <add>, %81, %cst_30 [1] : vector<8x8xf32> to vector<8xf32>
    %83 = vector.shape_cast %82 : vector<8xf32> to vector<8x1xf32>
    %84 = tpu.reciprocal %83 {approx = true} : vector<8x1xf32> -> vector<8x1xf32>
    %85 = vector.broadcast %84 : vector<8x1xf32> to vector<8x8xf32>
    %86 = arith.mulf %81, %85 : vector<8x8xf32>
    %cst_31 = arith.constant dense<0.000000e+00> : vector<8x32xf32>
    %87 = tpu.matmul %86, %75, %cst_31 {dimension_numbers = #tpu.dot_dimension_numbers<[1], [0], [0], [1], [0, 0, 1, 1], [], []>} : vector<8x8xf32>, vector<8x32xf32>, vector<8x32xf32> -> vector<8x32xf32>
    %88 = vector.extract_strided_slice %17 {offsets = [96, 0], sizes = [32, 128], strides = [1, 1]} : vector<128x128xf32> to vector<32x128xf32>
    %cst_32 = arith.constant dense<0.000000e+00> : vector<8x128xf32>
    %89 = tpu.matmul %87, %88, %cst_32 {dimension_numbers = #tpu.dot_dimension_numbers<[1], [0], [0], [1], [0, 0, 1, 1], [], []>} : vector<8x32xf32>, vector<32x128xf32>, vector<8x128xf32> -> vector<8x128xf32>
    %90 = arith.addf %72, %89 : vector<8x128xf32>
    %c0_33 = arith.constant 0 : index
    %c0_34 = arith.constant 0 : index
    %c0_35 = arith.constant 0 : index
    %91 = vector.load %arg6[%c0_33, %c0_34, %c0_35] : memref<1x1x128xf32, #tpu.memory_space<vmem>>, vector<1x1x128xf32>
    %92 = vector.shape_cast %91 : vector<1x1x128xf32> to vector<1x128xf32>
    %93 = vector.broadcast %92 : vector<1x128xf32> to vector<8x128xf32>
    %94 = arith.addf %90, %93 : vector<8x128xf32>
    %95 = arith.addf %3, %94 : vector<8x128xf32>
    %c0_36 = arith.constant 0 : index
    %c0_37 = arith.constant 0 : index
    %c0_38 = arith.constant 0 : index
    %96 = vector.load %arg7[%c0_36, %c0_37, %c0_38] : memref<1x1x128xf32, #tpu.memory_space<vmem>>, vector<1x1x128xf32>
    %97 = vector.shape_cast %96 : vector<1x1x128xf32> to vector<1x128xf32>
    %c0_39 = arith.constant 0 : index
    %c0_40 = arith.constant 0 : index
    %c0_41 = arith.constant 0 : index
    %98 = vector.load %arg8[%c0_39, %c0_40, %c0_41] : memref<1x1x128xf32, #tpu.memory_space<vmem>>, vector<1x1x128xf32>
    %99 = vector.shape_cast %98 : vector<1x1x128xf32> to vector<1x128xf32>
    %100 = tpu.iota {dimensions = array<i32: 1>} : vector<1x128xi32>
    %c32_i32 = arith.constant 32 : i32
    %101 = vector.broadcast %c32_i32 : i32 to vector<1x128xi32>
    %102 = arith.cmpi slt, %100, %101 : vector<1x128xi32>
    %103 = arith.extui %102 : vector<1x128xi1> to vector<1x128xi32>
    %104 = arith.sitofp %103 : vector<1x128xi32> to vector<1x128xf32>
    %105 = vector.broadcast %104 : vector<1x128xf32> to vector<8x128xf32>
    %106 = arith.mulf %95, %105 : vector<8x128xf32>
    %cst_42 = arith.constant dense<0.000000e+00> : vector<8xf32>
    %107 = vector.multi_reduction <add>, %106, %cst_42 [1] : vector<8x128xf32> to vector<8xf32>
    %108 = vector.shape_cast %107 : vector<8xf32> to vector<8x1xf32>
    %cst_43 = arith.constant 3.125000e-02 : f32
    %109 = vector.broadcast %cst_43 : f32 to vector<8x1xf32>
    %110 = arith.mulf %108, %109 : vector<8x1xf32>
    %111 = vector.broadcast %110 : vector<8x1xf32> to vector<8x128xf32>
    %112 = arith.subf %95, %111 : vector<8x128xf32>
    %113 = vector.broadcast %104 : vector<1x128xf32> to vector<8x128xf32>
    %114 = arith.mulf %112, %113 : vector<8x128xf32>
    %115 = arith.mulf %114, %114 : vector<8x128xf32>
    %cst_44 = arith.constant dense<0.000000e+00> : vector<8xf32>
    %116 = vector.multi_reduction <add>, %115, %cst_44 [1] : vector<8x128xf32> to vector<8xf32>
    %117 = vector.shape_cast %116 : vector<8xf32> to vector<8x1xf32>
    %cst_45 = arith.constant 3.125000e-02 : f32
    %118 = vector.broadcast %cst_45 : f32 to vector<8x1xf32>
    %119 = arith.mulf %117, %118 : vector<8x1xf32>
    %cst_46 = arith.constant 9.99999974E-6 : f32
    %120 = vector.broadcast %cst_46 : f32 to vector<8x1xf32>
    %121 = arith.addf %119, %120 : vector<8x1xf32>
    %122 = math.rsqrt %121 : vector<8x1xf32>
    %123 = vector.broadcast %122 : vector<8x1xf32> to vector<8x128xf32>
    %124 = arith.mulf %114, %123 : vector<8x128xf32>
    %125 = vector.broadcast %97 : vector<1x128xf32> to vector<8x128xf32>
    %126 = arith.mulf %124, %125 : vector<8x128xf32>
    %127 = vector.broadcast %99 : vector<1x128xf32> to vector<8x128xf32>
    %128 = arith.addf %126, %127 : vector<8x128xf32>
    %c0_47 = arith.constant 0 : index
    %c0_48 = arith.constant 0 : index
    %c0_49 = arith.constant 0 : index
    %129 = vector.load %arg9[%c0_47, %c0_48, %c0_49] : memref<1x128x128xf32, #tpu.memory_space<vmem>>, vector<1x128x128xf32>
    %130 = vector.shape_cast %129 : vector<1x128x128xf32> to vector<128x128xf32>
    %cst_50 = arith.constant dense<0.000000e+00> : vector<8x128xf32>
    %131 = tpu.matmul %128, %130, %cst_50 {dimension_numbers = #tpu.dot_dimension_numbers<[1], [0], [0], [1], [0, 0, 1, 1], [], []>} : vector<8x128xf32>, vector<128x128xf32>, vector<8x128xf32> -> vector<8x128xf32>
    %c0_51 = arith.constant 0 : index
    %c0_52 = arith.constant 0 : index
    %c0_53 = arith.constant 0 : index
    %132 = vector.load %arg10[%c0_51, %c0_52, %c0_53] : memref<1x1x128xf32, #tpu.memory_space<vmem>>, vector<1x1x128xf32>
    %133 = vector.shape_cast %132 : vector<1x1x128xf32> to vector<1x128xf32>
    %134 = vector.broadcast %133 : vector<1x128xf32> to vector<8x128xf32>
    %135 = arith.addf %131, %134 : vector<8x128xf32>
    %cst_54 = arith.constant 0.000000e+00 : f32
    %136 = vector.broadcast %cst_54 : f32 to vector<8x128xf32>
    %137 = arith.maximumf %135, %136 : vector<8x128xf32>
    %c0_55 = arith.constant 0 : index
    %c0_56 = arith.constant 0 : index
    %c0_57 = arith.constant 0 : index
    %138 = vector.load %arg11[%c0_55, %c0_56, %c0_57] : memref<1x128x128xf32, #tpu.memory_space<vmem>>, vector<1x128x128xf32>
    %139 = vector.shape_cast %138 : vector<1x128x128xf32> to vector<128x128xf32>
    %cst_58 = arith.constant dense<0.000000e+00> : vector<8x128xf32>
    %140 = tpu.matmul %137, %139, %cst_58 {dimension_numbers = #tpu.dot_dimension_numbers<[1], [0], [0], [1], [0, 0, 1, 1], [], []>} : vector<8x128xf32>, vector<128x128xf32>, vector<8x128xf32> -> vector<8x128xf32>
    %c0_59 = arith.constant 0 : index
    %c0_60 = arith.constant 0 : index
    %c0_61 = arith.constant 0 : index
    %141 = vector.load %arg12[%c0_59, %c0_60, %c0_61] : memref<1x1x128xf32, #tpu.memory_space<vmem>>, vector<1x1x128xf32>
    %142 = vector.shape_cast %141 : vector<1x1x128xf32> to vector<1x128xf32>
    %143 = vector.broadcast %142 : vector<1x128xf32> to vector<8x128xf32>
    %144 = arith.addf %140, %143 : vector<8x128xf32>
    %145 = arith.addf %128, %144 : vector<8x128xf32>
    %c0_62 = arith.constant 0 : index
    %c0_63 = arith.constant 0 : index
    %c0_64 = arith.constant 0 : index
    %146 = vector.load %arg13[%c0_62, %c0_63, %c0_64] : memref<1x1x128xf32, #tpu.memory_space<vmem>>, vector<1x1x128xf32>
    %147 = vector.shape_cast %146 : vector<1x1x128xf32> to vector<1x128xf32>
    %c0_65 = arith.constant 0 : index
    %c0_66 = arith.constant 0 : index
    %c0_67 = arith.constant 0 : index
    %148 = vector.load %arg14[%c0_65, %c0_66, %c0_67] : memref<1x1x128xf32, #tpu.memory_space<vmem>>, vector<1x1x128xf32>
    %149 = vector.shape_cast %148 : vector<1x1x128xf32> to vector<1x128xf32>
    %150 = tpu.iota {dimensions = array<i32: 1>} : vector<1x128xi32>
    %c32_i32_68 = arith.constant 32 : i32
    %151 = vector.broadcast %c32_i32_68 : i32 to vector<1x128xi32>
    %152 = arith.cmpi slt, %150, %151 : vector<1x128xi32>
    %153 = arith.extui %152 : vector<1x128xi1> to vector<1x128xi32>
    %154 = arith.sitofp %153 : vector<1x128xi32> to vector<1x128xf32>
    %155 = vector.broadcast %154 : vector<1x128xf32> to vector<8x128xf32>
    %156 = arith.mulf %145, %155 : vector<8x128xf32>
    %cst_69 = arith.constant dense<0.000000e+00> : vector<8xf32>
    %157 = vector.multi_reduction <add>, %156, %cst_69 [1] : vector<8x128xf32> to vector<8xf32>
    %158 = vector.shape_cast %157 : vector<8xf32> to vector<8x1xf32>
    %cst_70 = arith.constant 3.125000e-02 : f32
    %159 = vector.broadcast %cst_70 : f32 to vector<8x1xf32>
    %160 = arith.mulf %158, %159 : vector<8x1xf32>
    %161 = vector.broadcast %160 : vector<8x1xf32> to vector<8x128xf32>
    %162 = arith.subf %145, %161 : vector<8x128xf32>
    %163 = vector.broadcast %154 : vector<1x128xf32> to vector<8x128xf32>
    %164 = arith.mulf %162, %163 : vector<8x128xf32>
    %165 = arith.mulf %164, %164 : vector<8x128xf32>
    %cst_71 = arith.constant dense<0.000000e+00> : vector<8xf32>
    %166 = vector.multi_reduction <add>, %165, %cst_71 [1] : vector<8x128xf32> to vector<8xf32>
    %167 = vector.shape_cast %166 : vector<8xf32> to vector<8x1xf32>
    %cst_72 = arith.constant 3.125000e-02 : f32
    %168 = vector.broadcast %cst_72 : f32 to vector<8x1xf32>
    %169 = arith.mulf %167, %168 : vector<8x1xf32>
    %cst_73 = arith.constant 9.99999974E-6 : f32
    %170 = vector.broadcast %cst_73 : f32 to vector<8x1xf32>
    %171 = arith.addf %169, %170 : vector<8x1xf32>
    %172 = math.rsqrt %171 : vector<8x1xf32>
    %173 = vector.broadcast %172 : vector<8x1xf32> to vector<8x128xf32>
    %174 = arith.mulf %164, %173 : vector<8x128xf32>
    %175 = vector.broadcast %147 : vector<1x128xf32> to vector<8x128xf32>
    %176 = arith.mulf %174, %175 : vector<8x128xf32>
    %177 = vector.broadcast %149 : vector<1x128xf32> to vector<8x128xf32>
    %178 = arith.addf %176, %177 : vector<8x128xf32>
    %c0_74 = arith.constant 0 : index
    %c0_75 = arith.constant 0 : index
    %179 = vector.load %arg22[%c0_74, %c0_75] : memref<8x128xf32, #tpu.memory_space<vmem>>, vector<8x128xf32>
    tpu.vector_store %arg22[%c0_74, %c0_75], %178 {strides = array<i32>} : memref<8x128xf32, #tpu.memory_space<vmem>>, vector<8x128xf32>,
    %c1_i32 = arith.constant 1 : i32
    %180 = arith.cmpi eq, %arg1, %c1_i32 : i32
    %181 = arith.extui %180 : i1 to i32
    %c0_i32_76 = arith.constant 0 : i32
    %182 = arith.cmpi ne, %181, %c0_i32_76 : i32
    scf.if %182 {
      %cst_77 = arith.constant dense<0.000000e+00> : vector<128xf32>
      %183 = vector.multi_reduction <add>, %178, %cst_77 [0] : vector<8x128xf32> to vector<128xf32>
      %184 = vector.shape_cast %183 : vector<128xf32> to vector<1x128xf32>
      %cst_78 = arith.constant 8.000000e+00 : f32
      %185 = vector.broadcast %cst_78 : f32 to vector<1x128xf32>
      %186 = arith.divf %184, %185 : vector<1x128xf32>
      %c0_79 = arith.constant 0 : index
      %c0_80 = arith.constant 0 : index
      %187 = vector.load %arg15[%c0_79, %c0_80] : memref<128x128xf32, #tpu.memory_space<vmem>>, vector<128x128xf32>
      %cst_81 = arith.constant dense<0.000000e+00> : vector<1x128xf32>
      %188 = tpu.matmul %186, %187, %cst_81 {dimension_numbers = #tpu.dot_dimension_numbers<[1], [0], [0], [1], [0, 0, 1, 1], [], []>} : vector<1x128xf32>, vector<128x128xf32>, vector<1x128xf32> -> vector<1x128xf32>
      %c0_82 = arith.constant 0 : index
      %c0_83 = arith.constant 0 : index
      %189 = vector.load %arg16[%c0_82, %c0_83] : memref<1x128xf32, #tpu.memory_space<vmem>>, vector<1x128xf32>
      %190 = arith.addf %188, %189 : vector<1x128xf32>
      %cst_84 = arith.constant 0.000000e+00 : f32
      %191 = vector.broadcast %cst_84 : f32 to vector<1x128xf32>
      %192 = arith.maximumf %190, %191 : vector<1x128xf32>
      %c0_85 = arith.constant 0 : index
      %c0_86 = arith.constant 0 : index
      %193 = vector.load %arg17[%c0_85, %c0_86] : memref<128x128xf32, #tpu.memory_space<vmem>>, vector<128x128xf32>
      %cst_87 = arith.constant dense<0.000000e+00> : vector<1x128xf32>
      %194 = tpu.matmul %192, %193, %cst_87 {dimension_numbers = #tpu.dot_dimension_numbers<[1], [0], [0], [1], [0, 0, 1, 1], [], []>} : vector<1x128xf32>, vector<128x128xf32>, vector<1x128xf32> -> vector<1x128xf32>
      %c0_88 = arith.constant 0 : index
      %c0_89 = arith.constant 0 : index
      %195 = vector.load %arg18[%c0_88, %c0_89] : memref<1x128xf32, #tpu.memory_space<vmem>>, vector<1x128xf32>
      %196 = arith.addf %194, %195 : vector<1x128xf32>
      %cst_90 = arith.constant 0.000000e+00 : f32
      %197 = vector.broadcast %cst_90 : f32 to vector<1x128xf32>
      %198 = arith.maximumf %196, %197 : vector<1x128xf32>
      %c0_91 = arith.constant 0 : index
      %c0_92 = arith.constant 0 : index
      %199 = vector.load %arg19[%c0_91, %c0_92] : memref<128x128xf32, #tpu.memory_space<vmem>>, vector<128x128xf32>
      %cst_93 = arith.constant dense<0.000000e+00> : vector<1x128xf32>
      %200 = tpu.matmul %198, %199, %cst_93 {dimension_numbers = #tpu.dot_dimension_numbers<[1], [0], [0], [1], [0, 0, 1, 1], [], []>} : vector<1x128xf32>, vector<128x128xf32>, vector<1x128xf32> -> vector<1x128xf32>
      %c0_94 = arith.constant 0 : index
      %c0_95 = arith.constant 0 : index
      %201 = vector.load %arg20[%c0_94, %c0_95] : memref<1x128xf32, #tpu.memory_space<vmem>>, vector<1x128xf32>
      %202 = arith.addf %200, %201 : vector<1x128xf32>
      %c0_96 = arith.constant 0 : index
      %c0_97 = arith.constant 0 : index
      %c0_98 = arith.constant 0 : index
      %203 = vector.load %arg21[%c0_96, %c0_97, %c0_98] : memref<1x1x128xf32, #tpu.memory_space<vmem>>, vector<1x1x128xf32>
      %204 = vector.shape_cast %203 : vector<1x1x128xf32> to vector<1x128xf32>
      %205 = vector.shape_cast %202 : vector<1x128xf32> to vector<1x1x128xf32>
      tpu.vector_store %arg21[%c0_96, %c0_97, %c0_98], %205 {strides = array<i32>} : memref<1x1x128xf32, #tpu.memory_space<vmem>>, vector<1x1x128xf32>,
    } else {
    }
    return
  }
  func.func @transform_0(%arg0: i32, %arg1: i32) -> (i32, i32, i32) {
    %c0_i32 = arith.constant 0 : i32
    %c0_i32_0 = arith.constant 0 : i32
    %c0_i32_1 = arith.constant 0 : i32
    return %arg0, %c0_i32, %c0_i32_0 : i32, i32, i32
  }
  func.func @transform_1(%arg0: i32, %arg1: i32) -> (i32, i32, i32) {
    %c0_i32 = arith.constant 0 : i32
    %c0_i32_0 = arith.constant 0 : i32
    %c0_i32_1 = arith.constant 0 : i32
    return %arg1, %c0_i32, %c0_i32_0 : i32, i32, i32
  }
  func.func @transform_2(%arg0: i32, %arg1: i32) -> (i32, i32, i32) {
    %c0_i32 = arith.constant 0 : i32
    %c0_i32_0 = arith.constant 0 : i32
    %c0_i32_1 = arith.constant 0 : i32
    return %arg1, %c0_i32, %c0_i32_0 : i32, i32, i32
  }
  func.func @transform_3(%arg0: i32, %arg1: i32) -> (i32, i32, i32) {
    %c0_i32 = arith.constant 0 : i32
    %c0_i32_0 = arith.constant 0 : i32
    %c0_i32_1 = arith.constant 0 : i32
    return %arg1, %c0_i32, %c0_i32_0 : i32, i32, i32
  }
  func.func @transform_4(%arg0: i32, %arg1: i32) -> (i32, i32, i32) {
    %c0_i32 = arith.constant 0 : i32
    %c0_i32_0 = arith.constant 0 : i32
    %c0_i32_1 = arith.constant 0 : i32
    return %arg1, %c0_i32, %c0_i32_0 : i32, i32, i32
  }
  func.func @transform_5(%arg0: i32, %arg1: i32) -> (i32, i32, i32) {
    %c0_i32 = arith.constant 0 : i32
    %c0_i32_0 = arith.constant 0 : i32
    %c0_i32_1 = arith.constant 0 : i32
    return %arg1, %c0_i32, %c0_i32_0 : i32, i32, i32
  }
  func.func @transform_6(%arg0: i32, %arg1: i32) -> (i32, i32, i32) {
    %c0_i32 = arith.constant 0 : i32
    %c0_i32_0 = arith.constant 0 : i32
    %c0_i32_1 = arith.constant 0 : i32
    return %arg1, %c0_i32, %c0_i32_0 : i32, i32, i32
  }
  func.func @transform_7(%arg0: i32, %arg1: i32) -> (i32, i32, i32) {
    %c0_i32 = arith.constant 0 : i32
    %c0_i32_0 = arith.constant 0 : i32
    %c0_i32_1 = arith.constant 0 : i32
    return %arg1, %c0_i32, %c0_i32_0 : i32, i32, i32
  }
  func.func @transform_8(%arg0: i32, %arg1: i32) -> (i32, i32, i32) {
    %c0_i32 = arith.constant 0 : i32
    %c0_i32_0 = arith.constant 0 : i32
    %c0_i32_1 = arith.constant 0 : i32
    return %arg1, %c0_i32, %c0_i32_0 : i32, i32, i32
  }
  func.func @transform_9(%arg0: i32, %arg1: i32) -> (i32, i32, i32) {
    %c0_i32 = arith.constant 0 : i32
    %c0_i32_0 = arith.constant 0 : i32
    %c0_i32_1 = arith.constant 0 : i32
    return %arg1, %c0_i32, %c0_i32_0 : i32, i32, i32
  }
  func.func @transform_10(%arg0: i32, %arg1: i32) -> (i32, i32, i32) {
    %c0_i32 = arith.constant 0 : i32
    %c0_i32_0 = arith.constant 0 : i32
    %c0_i32_1 = arith.constant 0 : i32
    return %arg1, %c0_i32, %c0_i32_0 : i32, i32, i32
  }
  func.func @transform_11(%arg0: i32, %arg1: i32) -> (i32, i32, i32) {
    %c0_i32 = arith.constant 0 : i32
    %c0_i32_0 = arith.constant 0 : i32
    %c0_i32_1 = arith.constant 0 : i32
    return %arg1, %c0_i32, %c0_i32_0 : i32, i32, i32
  }
  func.func @transform_12(%arg0: i32, %arg1: i32) -> (i32, i32, i32) {
    %c0_i32 = arith.constant 0 : i32
    %c0_i32_0 = arith.constant 0 : i32
    %c0_i32_1 = arith.constant 0 : i32
    return %arg1, %c0_i32, %c0_i32_0 : i32, i32, i32
  }
  func.func @transform_13(%arg0: i32, %arg1: i32) -> (i32, i32) {
    %c0_i32 = arith.constant 0 : i32
    %c0_i32_0 = arith.constant 0 : i32
    %c0_i32_1 = arith.constant 0 : i32
    return %c0_i32, %c0_i32_0 : i32, i32
  }
  func.func @transform_14(%arg0: i32, %arg1: i32) -> (i32, i32) {
    %c0_i32 = arith.constant 0 : i32
    %c0_i32_0 = arith.constant 0 : i32
    %c0_i32_1 = arith.constant 0 : i32
    return %c0_i32, %c0_i32_0 : i32, i32
  }
  func.func @transform_15(%arg0: i32, %arg1: i32) -> (i32, i32) {
    %c0_i32 = arith.constant 0 : i32
    %c0_i32_0 = arith.constant 0 : i32
    %c0_i32_1 = arith.constant 0 : i32
    return %c0_i32, %c0_i32_0 : i32, i32
  }
  func.func @transform_16(%arg0: i32, %arg1: i32) -> (i32, i32) {
    %c0_i32 = arith.constant 0 : i32
    %c0_i32_0 = arith.constant 0 : i32
    %c0_i32_1 = arith.constant 0 : i32
    return %c0_i32, %c0_i32_0 : i32, i32
  }
  func.func @transform_17(%arg0: i32, %arg1: i32) -> (i32, i32) {
    %c0_i32 = arith.constant 0 : i32
    %c0_i32_0 = arith.constant 0 : i32
    %c0_i32_1 = arith.constant 0 : i32
    return %c0_i32, %c0_i32_0 : i32, i32
  }
  func.func @transform_18(%arg0: i32, %arg1: i32) -> (i32, i32) {
    %c0_i32 = arith.constant 0 : i32
    %c0_i32_0 = arith.constant 0 : i32
    %c0_i32_1 = arith.constant 0 : i32
    return %c0_i32, %c0_i32_0 : i32, i32
  }
  func.func @transform_19(%arg0: i32, %arg1: i32) -> (i32, i32, i32) {
    %c0_i32 = arith.constant 0 : i32
    %c0_i32_0 = arith.constant 0 : i32
    %c0_i32_1 = arith.constant 0 : i32
    return %arg0, %c0_i32, %c0_i32_0 : i32, i32, i32
  }
}

</mosaic_0001>

<llo_original>
// kernel: vanilla_transformer_forward.1
$region0: #{vanilla_transformer_forward.1}
  #allocation0 [shape = 'u32[]', space=smem, size = 0x4, offset = 0x4, fixed_abs, tag = 'smem constant byte address 0x4 - core index']
  #allocation1 [shape = 'u32[72,128]{1,0:T(1,128)}', space=vmem, size = 0x9000, scoped, tag = 'internal scratch']
  #allocation2 [shape = 'f32[8,128]{1,0:T(8,128)}', space=vmem, size = 0x1000, scoped, tag = 'scratch operand']
  %s0 = inlined_call_operand.vmem [shape: f32[2,8,128], index: 0, kind: input, shape index: {}]
  %s1 = inlined_call_operand.hbm [shape: f32[2,128,384], index: 1, kind: input, shape index: {}]
  %s2 = inlined_call_operand.vmem [shape: f32[2,1,384], index: 2, kind: input, shape index: {}]
  %s3 = inlined_call_operand.hbm [shape: f32[2,128,128], index: 3, kind: input, shape index: {}]
  %s4 = inlined_call_operand.vmem [shape: f32[2,1,128], index: 4, kind: input, shape index: {}]
  %s5 = inlined_call_operand.vmem [shape: f32[2,1,128], index: 5, kind: input, shape index: {}]
  %s6 = inlined_call_operand.vmem [shape: f32[2,1,128], index: 6, kind: input, shape index: {}]
  %s7 = inlined_call_operand.hbm [shape: f32[2,128,128], index: 7, kind: input, shape index: {}]
  %s8 = inlined_call_operand.vmem [shape: f32[2,1,128], index: 8, kind: input, shape index: {}]
  %s9 = inlined_call_operand.hbm [shape: f32[2,128,128], index: 9, kind: input, shape index: {}]
  %s10 = inlined_call_operand.vmem [shape: f32[2,1,128], index: 10, kind: input, shape index: {}]
  %s11 = inlined_call_operand.vmem [shape: f32[2,1,128], index: 11, kind: input, shape index: {}]
  %s12 = inlined_call_operand.vmem [shape: f32[2,1,128], index: 12, kind: input, shape index: {}]
  %s13 = inlined_call_operand.hbm [shape: f32[128,128], index: 13, kind: input, shape index: {}]
  %s14 = inlined_call_operand.vmem [shape: f32[1,128], index: 14, kind: input, shape index: {}]
  %s15 = inlined_call_operand.hbm [shape: f32[128,128], index: 15, kind: input, shape index: {}]
  %s16 = inlined_call_operand.vmem [shape: f32[1,128], index: 16, kind: input, shape index: {}]
  %s17 = inlined_call_operand.hbm [shape: f32[128,128], index: 17, kind: input, shape index: {}]
  %s18 = inlined_call_operand.vmem [shape: f32[1,128], index: 18, kind: input, shape index: {}]
  %s19 = inlined_call_operand.hbm [shape: f32[2,1,128], index: 19, kind: output, shape index: {}]
  %s20 = sld [smem:[#allocation0]]
  $region145: #{vanilla_transformer_forward.1} parent=0
    _
  %s22 = ssub.s32 1, %s20
  %s23 = scalar_select 0, %s22, %s20
  $region1: #{vanilla_transformer_forward.1} parent=0
    #allocation3 [shape = 'u8[393216]{0}', space=vmem, size = 0x60000, scoped, tag = 'input window, operand 1']
    #allocation4 [shape = 's32[2]{0}', space=sflag, size = 0x8, scoped, tag = 'scoped memory for vanilla_transformer_forward.1']
    #allocation5 [shape = 's32[2]{0}', space=sflag, size = 0x8, scoped, tag = 'scoped memory for vanilla_transformer_forward.1']
    #allocation6 [shape = 'u8[131072]{0}', space=vmem, size = 0x20000, scoped, tag = 'input window, operand 3']
    #allocation7 [shape = 's32[2]{0}', space=sflag, size = 0x8, scoped, tag = 'scoped memory for vanilla_transformer_forward.1']
    #allocation8 [shape = 'u8[131072]{0}', space=vmem, size = 0x20000, scoped, tag = 'input window, operand 7']
    #allocation9 [shape = 'u8[131072]{0}', space=vmem, size = 0x20000, scoped, tag = 'input window, operand 9']
    #allocation10 [shape = 's32[2]{0}', space=sflag, size = 0x8, scoped, tag = 'scoped memory for vanilla_transformer_forward.1']
    #allocation11 [shape = 'u8[65536]{0}', space=vmem, size = 0x10000, scoped, tag = 'input window, operand 13, single buffered']
    #allocation12 [shape = 'u8[65536]{0}', space=vmem, size = 0x10000, scoped, tag = 'input window, operand 15, single buffered']
    #allocation13 [shape = 's32[1]{0}', space=sflag, size = 0x4, scoped, tag = 'scoped memory for vanilla_transformer_forward.1']
    #allocation14 [shape = 'u8[65536]{0}', space=vmem, size = 0x10000, scoped, tag = 'input window, operand 17, single buffered']
    #allocation15 [shape = 'u8[1024]{0}', space=vmem, size = 0x400, scoped, tag = 'output window, operand 0']
    %24 = vsyncpa [#allocation4], 0
    %s25 = scalar_lea.sflag [#allocation4], 1
    %26 = vsyncpa %s25, 0
    %27 = vsyncpa [#allocation7], 0
    %s28 = scalar_lea.sflag [#allocation7], 1
    %29 = vsyncpa %s28, 0
    %30 = vsyncpa [#allocation10], 0
    %s31 = scalar_lea.sflag [#allocation10], 1
    %32 = vsyncpa %s31, 0
    %33 = vsyncpa [#allocation13], 0
    %34 = vsyncpa [#allocation5], 0
    %s35 = scalar_lea.sflag [#allocation5], 1
    %36 = vsyncpa %s35, 0
    loop: start=0, step=1, limit=6
    $region2: #{vanilla_transformer_forward.1} parent=1 // loop_pre_header
      _
    $region3: #{vanilla_transformer_forward.1} parent=1 // loop_header
      %s38 = sphi 0, %s42
      %p39 = scmp.ge.s32.totalorder %s38, 6
      %s45 = sphi 0, %s57
      %s46 = sphi 0, %s53
      %s47 = sphi 0, %s45
      %s48 = sphi 0, %s46
      %s49 = sphi 0, %s47
      %s50 = sphi 0, %s48
      %s60 = sphi 0, %s62
      %s63 = sphi 0, %s60
      %s64 = sphi 0, %s63
      %s80 = sphi 0, %s64
      %s86 = sphi 0, %s88
      %s89 = sphi 0, %s86
      %s90 = sphi 0, %s89
      %s106 = sphi 0, %s90
      %s112 = sphi 0, %s114
      %s115 = sphi 0, %s112
      %s116 = sphi 0, %s115
      %s132 = sphi 0, %s116
      %s138 = sphi 0, %s140
      %s141 = sphi 0, %s138
      %s142 = sphi 0, %s141
      %s158 = sphi 0, %s142
      %s164 = sphi 0, %s166
      %s167 = sphi 0, %s164
      %s168 = sphi 0, %s167
      %s184 = sphi 0, %s168
      %s190 = sphi 0, %s192
      %s193 = sphi 0, %s190
      %s194 = sphi 0, %s193
      %s210 = sphi 0, %s194
      %s216 = sphi 0, %s218
      %s219 = sphi 0, %s216
      %s220 = sphi 0, %s219
      %s236 = sphi 0, %s220
      %s242 = sphi 0, %s244
      %s245 = sphi 0, %s242
      %s246 = sphi 0, %s245
      %s262 = sphi 0, %s246
      %s268 = sphi 0, %s270
      %s271 = sphi 0, %s268
      %s272 = sphi 0, %s271
      %s288 = sphi 0, %s272
      %s294 = sphi 0, %s296
      %s297 = sphi 0, %s294
      %s298 = sphi 0, %s297
      %s314 = sphi 0, %s298
      %s320 = sphi 0, %s322
      %s323 = sphi 0, %s320
      %s324 = sphi 0, %s323
      %s340 = sphi 0, %s324
      %s346 = sphi 0, %s348
      %s349 = sphi 0, %s346
      %s350 = sphi 0, %s349
      %s366 = sphi 0, %s350
      %s372 = sphi 0, %s374
      %s375 = sphi 0, %s372
      %s376 = sphi 0, %s375
      %s392 = sphi 0, %s376
      %s396 = sphi 0, %s396
      %s398 = sphi 0, %s396
      %s399 = sphi 0, %s398
      %s413 = sphi 0, %s399
      %s417 = sphi 0, %s417
      %s419 = sphi 0, %s417
      %s420 = sphi 0, %s419
      %s434 = sphi 0, %s420
      %s438 = sphi 0, %s438
      %s440 = sphi 0, %s438
      %s441 = sphi 0, %s440
      %s455 = sphi 0, %s441
      %s459 = sphi 0, %s459
      %s461 = sphi 0, %s459
      %s462 = sphi 0, %s461
      %s476 = sphi 0, %s462
      %s480 = sphi 0, %s480
      %s482 = sphi 0, %s480
      %s483 = sphi 0, %s482
      %s497 = sphi 0, %s483
      %s501 = sphi 0, %s501
      %s503 = sphi 0, %s501
      %s504 = sphi 0, %s503
      %s518 = sphi 0, %s504
      %s524 = sphi 0, %s526
      %s527 = sphi 0, %s524
      %s528 = sphi 0, %s527
      %s544 = sphi 0, %s528
    $region4: #{vanilla_transformer_forward.1} parent=1 // loop_header_branch
      %41 = sbr.rel (%p39) target = $region8
    $region5: #{vanilla_transformer_forward.1} parent=1 // loop_body
      %s43 = ssub.s32 %s38, 1
      %s44 = ssub.s32 %s38, 2
      %s51 = sadd.s32 1, %s46
      %p52 = scmp.ge.s32.totalorder %s51, 2
      %s53 = scalar_select %p52, 0, %s51
      %s54 = sadd.s32 1, %s45
      %s55 = scalar_select %p52, %s54, %s45
      %p56 = scmp.ge.s32.totalorder %s55, 2
      %s57 = scalar_select %p56, 0, %s55
      %s58 = ssub.s32 %s45, %s57
      %p59 = scmp.eq.s32.totalorder %s58, 0
      %s61 = sadd.s32 %s60, 1
      %s62 = scalar_select %p59, %s60, %s61
      %p65 = pneg %p59
      %p66 = scmp.eq.s32.totalorder %s38, 3
      %p67 = por %p65, %p66
      %p68 = scmp.ne.s32.totalorder %s60, %s63
      %p69 = scmp.eq.s32.totalorder %s38, 0
      %p70 = por %p68, %p69
      %p71 = scmp.ne.s32.totalorder %s60, %s63
      %p72 = scmp.eq.s32.totalorder %s43, 3
      %p73 = por %p71, %p72
      %p74 = scmp.ne.s32.totalorder %s63, %s64
      %p75 = scmp.eq.s32.totalorder %s43, 0
      %p76 = por %p74, %p75
      %p77 = scmp.ne.s32.totalorder %s63, %s64
      %p78 = scmp.eq.s32.totalorder %s44, 3
      %p79 = por %p77, %p78
      %p81 = scmp.ne.s32.totalorder %s64, %s80
      %p82 = scmp.eq.s32.totalorder %s44, 0
      %p83 = por %p81, %p82
      %s84 = ssub.s32 %s46, %s53
      %p85 = scmp.eq.s32.totalorder %s84, 0
      %s87 = sadd.s32 %s86, 1
      %s88 = scalar_select %p85, %s86, %s87
      %p91 = pneg %p85
      %p92 = scmp.eq.s32.totalorder %s38, 3
      %p93 = por %p91, %p92
      %p94 = scmp.ne.s32.totalorder %s86, %s89
      %p95 = scmp.eq.s32.totalorder %s38, 0
      %p96 = por %p94, %p95
      %p97 = scmp.ne.s32.totalorder %s86, %s89
      %p98 = scmp.eq.s32.totalorder %s43, 3
      %p99 = por %p97, %p98
      %p100 = scmp.ne.s32.totalorder %s89, %s90
      %p101 = scmp.eq.s32.totalorder %s43, 0
      %p102 = por %p100, %p101
      %p103 = scmp.ne.s32.totalorder %s89, %s90
      %p104 = scmp.eq.s32.totalorder %s44, 3
      %p105 = por %p103, %p104
      %p107 = scmp.ne.s32.totalorder %s90, %s106
      %p108 = scmp.eq.s32.totalorder %s44, 0
      %p109 = por %p107, %p108
      %s110 = ssub.s32 %s46, %s53
      %p111 = scmp.eq.s32.totalorder %s110, 0
      %s113 = sadd.s32 %s112, 1
      %s114 = scalar_select %p111, %s112, %s113
      %p117 = pneg %p111
      %p118 = scmp.eq.s32.totalorder %s38, 3
      %p119 = por %p117, %p118
      %p120 = scmp.ne.s32.totalorder %s112, %s115
      %p121 = scmp.eq.s32.totalorder %s38, 0
      %p122 = por %p120, %p121
      %p123 = scmp.ne.s32.totalorder %s112, %s115
      %p124 = scmp.eq.s32.totalorder %s43, 3
      %p125 = por %p123, %p124
      %p126 = scmp.ne.s32.totalorder %s115, %s116
      %p127 = scmp.eq.s32.totalorder %s43, 0
      %p128 = por %p126, %p127
      %p129 = scmp.ne.s32.totalorder %s115, %s116
      %p130 = scmp.eq.s32.totalorder %s44, 3
      %p131 = por %p129, %p130
      %p133 = scmp.ne.s32.totalorder %s116, %s132
      %p134 = scmp.eq.s32.totalorder %s44, 0
      %p135 = por %p133, %p134
      %s136 = ssub.s32 %s46, %s53
      %p137 = scmp.eq.s32.totalorder %s136, 0
      %s139 = sadd.s32 %s138, 1
      %s140 = scalar_select %p137, %s138, %s139
      %p143 = pneg %p137
      %p144 = scmp.eq.s32.totalorder %s38, 3
      %p145 = por %p143, %p144
      %p146 = scmp.ne.s32.totalorder %s138, %s141
      %p147 = scmp.eq.s32.totalorder %s38, 0
      %p148 = por %p146, %p147
      %p149 = scmp.ne.s32.totalorder %s138, %s141
      %p150 = scmp.eq.s32.totalorder %s43, 3
      %p151 = por %p149, %p150
      %p152 = scmp.ne.s32.totalorder %s141, %s142
      %p153 = scmp.eq.s32.totalorder %s43, 0
      %p154 = por %p152, %p153
      %p155 = scmp.ne.s32.totalorder %s141, %s142
      %p156 = scmp.eq.s32.totalorder %s44, 3
      %p157 = por %p155, %p156
      %p159 = scmp.ne.s32.totalorder %s142, %s158
      %p160 = scmp.eq.s32.totalorder %s44, 0
      %p161 = por %p159, %p160
      %s162 = ssub.s32 %s46, %s53
      %p163 = scmp.eq.s32.totalorder %s162, 0
      %s165 = sadd.s32 %s164, 1
      %s166 = scalar_select %p163, %s164, %s165
      %p169 = pneg %p163
      %p170 = scmp.eq.s32.totalorder %s38, 3
      %p171 = por %p169, %p170
      %p172 = scmp.ne.s32.totalorder %s164, %s167
      %p173 = scmp.eq.s32.totalorder %s38, 0
      %p174 = por %p172, %p173
      %p175 = scmp.ne.s32.totalorder %s164, %s167
      %p176 = scmp.eq.s32.totalorder %s43, 3
      %p177 = por %p175, %p176
      %p178 = scmp.ne.s32.totalorder %s167, %s168
      %p179 = scmp.eq.s32.totalorder %s43, 0
      %p180 = por %p178, %p179
      %p181 = scmp.ne.s32.totalorder %s167, %s168
      %p182 = scmp.eq.s32.totalorder %s44, 3
      %p183 = por %p181, %p182
      %p185 = scmp.ne.s32.totalorder %s168, %s184
      %p186 = scmp.eq.s32.totalorder %s44, 0
      %p187 = por %p185, %p186
      %s188 = ssub.s32 %s46, %s53
      %p189 = scmp.eq.s32.totalorder %s188, 0
      %s191 = sadd.s32 %s190, 1
      %s192 = scalar_select %p189, %s190, %s191
      %p195 = pneg %p189
      %p196 = scmp.eq.s32.totalorder %s38, 3
      %p197 = por %p195, %p196
      %p198 = scmp.ne.s32.totalorder %s190, %s193
      %p199 = scmp.eq.s32.totalorder %s38, 0
      %p200 = por %p198, %p199
      %p201 = scmp.ne.s32.totalorder %s190, %s193
      %p202 = scmp.eq.s32.totalorder %s43, 3
      %p203 = por %p201, %p202
      %p204 = scmp.ne.s32.totalorder %s193, %s194
      %p205 = scmp.eq.s32.totalorder %s43, 0
      %p206 = por %p204, %p205
      %p207 = scmp.ne.s32.totalorder %s193, %s194
      %p208 = scmp.eq.s32.totalorder %s44, 3
      %p209 = por %p207, %p208
      %p211 = scmp.ne.s32.totalorder %s194, %s210
      %p212 = scmp.eq.s32.totalorder %s44, 0
      %p213 = por %p211, %p212
      %s214 = ssub.s32 %s46, %s53
      %p215 = scmp.eq.s32.totalorder %s214, 0
      %s217 = sadd.s32 %s216, 1
      %s218 = scalar_select %p215, %s216, %s217
      %p221 = pneg %p215
      %p222 = scmp.eq.s32.totalorder %s38, 3
      %p223 = por %p221, %p222
      %p224 = scmp.ne.s32.totalorder %s216, %s219
      %p225 = scmp.eq.s32.totalorder %s38, 0
      %p226 = por %p224, %p225
      %p227 = scmp.ne.s32.totalorder %s216, %s219
      %p228 = scmp.eq.s32.totalorder %s43, 3
      %p229 = por %p227, %p228
      %p230 = scmp.ne.s32.totalorder %s219, %s220
      %p231 = scmp.eq.s32.totalorder %s43, 0
      %p232 = por %p230, %p231
      %p233 = scmp.ne.s32.totalorder %s219, %s220
      %p234 = scmp.eq.s32.totalorder %s44, 3
      %p235 = por %p233, %p234
      %p237 = scmp.ne.s32.totalorder %s220, %s236
      %p238 = scmp.eq.s32.totalorder %s44, 0
      %p239 = por %p237, %p238
      %s240 = ssub.s32 %s46, %s53
      %p241 = scmp.eq.s32.totalorder %s240, 0
      %s243 = sadd.s32 %s242, 1
      %s244 = scalar_select %p241, %s242, %s243
      %p247 = pneg %p241
      %p248 = scmp.eq.s32.totalorder %s38, 3
      %p249 = por %p247, %p248
      %p250 = scmp.ne.s32.totalorder %s242, %s245
      %p251 = scmp.eq.s32.totalorder %s38, 0
      %p252 = por %p250, %p251
      %p253 = scmp.ne.s32.totalorder %s242, %s245
      %p254 = scmp.eq.s32.totalorder %s43, 3
      %p255 = por %p253, %p254
      %p256 = scmp.ne.s32.totalorder %s245, %s246
      %p257 = scmp.eq.s32.totalorder %s43, 0
      %p258 = por %p256, %p257
      %p259 = scmp.ne.s32.totalorder %s245, %s246
      %p260 = scmp.eq.s32.totalorder %s44, 3
      %p261 = por %p259, %p260
      %p263 = scmp.ne.s32.totalorder %s246, %s262
      %p264 = scmp.eq.s32.totalorder %s44, 0
      %p265 = por %p263, %p264
      %s266 = ssub.s32 %s46, %s53
      %p267 = scmp.eq.s32.totalorder %s266, 0
      %s269 = sadd.s32 %s268, 1
      %s270 = scalar_select %p267, %s268, %s269
      %p273 = pneg %p267
      %p274 = scmp.eq.s32.totalorder %s38, 3
      %p275 = por %p273, %p274
      %p276 = scmp.ne.s32.totalorder %s268, %s271
      %p277 = scmp.eq.s32.totalorder %s38, 0
      %p278 = por %p276, %p277
      %p279 = scmp.ne.s32.totalorder %s268, %s271
      %p280 = scmp.eq.s32.totalorder %s43, 3
      %p281 = por %p279, %p280
      %p282 = scmp.ne.s32.totalorder %s271, %s272
      %p283 = scmp.eq.s32.totalorder %s43, 0
      %p284 = por %p282, %p283
      %p285 = scmp.ne.s32.totalorder %s271, %s272
      %p286 = scmp.eq.s32.totalorder %s44, 3
      %p287 = por %p285, %p286
      %p289 = scmp.ne.s32.totalorder %s272, %s288
      %p290 = scmp.eq.s32.totalorder %s44, 0
      %p291 = por %p289, %p290
      %s292 = ssub.s32 %s46, %s53
      %p293 = scmp.eq.s32.totalorder %s292, 0
      %s295 = sadd.s32 %s294, 1
      %s296 = scalar_select %p293, %s294, %s295
      %p299 = pneg %p293
      %p300 = scmp.eq.s32.totalorder %s38, 3
      %p301 = por %p299, %p300
      %p302 = scmp.ne.s32.totalorder %s294, %s297
      %p303 = scmp.eq.s32.totalorder %s38, 0
      %p304 = por %p302, %p303
      %p305 = scmp.ne.s32.totalorder %s294, %s297
      %p306 = scmp.eq.s32.totalorder %s43, 3
      %p307 = por %p305, %p306
      %p308 = scmp.ne.s32.totalorder %s297, %s298
      %p309 = scmp.eq.s32.totalorder %s43, 0
      %p310 = por %p308, %p309
      %p311 = scmp.ne.s32.totalorder %s297, %s298
      %p312 = scmp.eq.s32.totalorder %s44, 3
      %p313 = por %p311, %p312
      %p315 = scmp.ne.s32.totalorder %s298, %s314
      %p316 = scmp.eq.s32.totalorder %s44, 0
      %p317 = por %p315, %p316
      %s318 = ssub.s32 %s46, %s53
      %p319 = scmp.eq.s32.totalorder %s318, 0
      %s321 = sadd.s32 %s320, 1
      %s322 = scalar_select %p319, %s320, %s321
      %p325 = pneg %p319
      %p326 = scmp.eq.s32.totalorder %s38, 3
      %p327 = por %p325, %p326
      %p328 = scmp.ne.s32.totalorder %s320, %s323
      %p329 = scmp.eq.s32.totalorder %s38, 0
      %p330 = por %p328, %p329
      %p331 = scmp.ne.s32.totalorder %s320, %s323
      %p332 = scmp.eq.s32.totalorder %s43, 3
      %p333 = por %p331, %p332
      %p334 = scmp.ne.s32.totalorder %s323, %s324
      %p335 = scmp.eq.s32.totalorder %s43, 0
      %p336 = por %p334, %p335
      %p337 = scmp.ne.s32.totalorder %s323, %s324
      %p338 = scmp.eq.s32.totalorder %s44, 3
      %p339 = por %p337, %p338
      %p341 = scmp.ne.s32.totalorder %s324, %s340
      %p342 = scmp.eq.s32.totalorder %s44, 0
      %p343 = por %p341, %p342
      %s344 = ssub.s32 %s46, %s53
      %p345 = scmp.eq.s32.totalorder %s344, 0
      %s347 = sadd.s32 %s346, 1
      %s348 = scalar_select %p345, %s346, %s347
      %p351 = pneg %p345
      %p352 = scmp.eq.s32.totalorder %s38, 3
      %p353 = por %p351, %p352
      %p354 = scmp.ne.s32.totalorder %s346, %s349
      %p355 = scmp.eq.s32.totalorder %s38, 0
      %p356 = por %p354, %p355
      %p357 = scmp.ne.s32.totalorder %s346, %s349
      %p358 = scmp.eq.s32.totalorder %s43, 3
      %p359 = por %p357, %p358
      %p360 = scmp.ne.s32.totalorder %s349, %s350
      %p361 = scmp.eq.s32.totalorder %s43, 0
      %p362 = por %p360, %p361
      %p363 = scmp.ne.s32.totalorder %s349, %s350
      %p364 = scmp.eq.s32.totalorder %s44, 3
      %p365 = por %p363, %p364
      %p367 = scmp.ne.s32.totalorder %s350, %s366
      %p368 = scmp.eq.s32.totalorder %s44, 0
      %p369 = por %p367, %p368
      %s370 = ssub.s32 %s46, %s53
      %p371 = scmp.eq.s32.totalorder %s370, 0
      %s373 = sadd.s32 %s372, 1
      %s374 = scalar_select %p371, %s372, %s373
      %p377 = pneg %p371
      %p378 = scmp.eq.s32.totalorder %s38, 3
      %p379 = por %p377, %p378
      %p380 = scmp.ne.s32.totalorder %s372, %s375
      %p381 = scmp.eq.s32.totalorder %s38, 0
      %p382 = por %p380, %p381
      %p383 = scmp.ne.s32.totalorder %s372, %s375
      %p384 = scmp.eq.s32.totalorder %s43, 3
      %p385 = por %p383, %p384
      %p386 = scmp.ne.s32.totalorder %s375, %s376
      %p387 = scmp.eq.s32.totalorder %s43, 0
      %p388 = por %p386, %p387
      %p389 = scmp.ne.s32.totalorder %s375, %s376
      %p390 = scmp.eq.s32.totalorder %s44, 3
      %p391 = por %p389, %p390
      %p393 = scmp.ne.s32.totalorder %s376, %s392
      %p394 = scmp.eq.s32.totalorder %s44, 0
      %p395 = por %p393, %p394
      %s397 = sadd.s32 %s396, 1
      %p400 = scmp.eq.s32.totalorder %s38, 3
      %p401 = scmp.ne.s32.totalorder %s396, %s398
      %p402 = scmp.eq.s32.totalorder %s38, 0
      %p403 = por %p401, %p402
      %p404 = scmp.ne.s32.totalorder %s396, %s398
      %p405 = scmp.eq.s32.totalorder %s43, 3
      %p406 = por %p404, %p405
      %p407 = scmp.ne.s32.totalorder %s398, %s399
      %p408 = scmp.eq.s32.totalorder %s43, 0
      %p409 = por %p407, %p408
      %p410 = scmp.ne.s32.totalorder %s398, %s399
      %p411 = scmp.eq.s32.totalorder %s44, 3
      %p412 = por %p410, %p411
      %p414 = scmp.ne.s32.totalorder %s399, %s413
      %p415 = scmp.eq.s32.totalorder %s44, 0
      %p416 = por %p414, %p415
      %s418 = sadd.s32 %s417, 1
      %p421 = scmp.eq.s32.totalorder %s38, 3
      %p422 = scmp.ne.s32.totalorder %s417, %s419
      %p423 = scmp.eq.s32.totalorder %s38, 0
      %p424 = por %p422, %p423
      %p425 = scmp.ne.s32.totalorder %s417, %s419
      %p426 = scmp.eq.s32.totalorder %s43, 3
      %p427 = por %p425, %p426
      %p428 = scmp.ne.s32.totalorder %s419, %s420
      %p429 = scmp.eq.s32.totalorder %s43, 0
      %p430 = por %p428, %p429
      %p431 = scmp.ne.s32.totalorder %s419, %s420
      %p432 = scmp.eq.s32.totalorder %s44, 3
      %p433 = por %p431, %p432
      %p435 = scmp.ne.s32.totalorder %s420, %s434
      %p436 = scmp.eq.s32.totalorder %s44, 0
      %p437 = por %p435, %p436
      %s439 = sadd.s32 %s438, 1
      %p442 = scmp.eq.s32.totalorder %s38, 3
      %p443 = scmp.ne.s32.totalorder %s438, %s440
      %p444 = scmp.eq.s32.totalorder %s38, 0
      %p445 = por %p443, %p444
      %p446 = scmp.ne.s32.totalorder %s438, %s440
      %p447 = scmp.eq.s32.totalorder %s43, 3
      %p448 = por %p446, %p447
      %p449 = scmp.ne.s32.totalorder %s440, %s441
      %p450 = scmp.eq.s32.totalorder %s43, 0
      %p451 = por %p449, %p450
      %p452 = scmp.ne.s32.totalorder %s440, %s441
      %p453 = scmp.eq.s32.totalorder %s44, 3
      %p454 = por %p452, %p453
      %p456 = scmp.ne.s32.totalorder %s441, %s455
      %p457 = scmp.eq.s32.totalorder %s44, 0
      %p458 = por %p456, %p457
      %s460 = sadd.s32 %s459, 1
      %p463 = scmp.eq.s32.totalorder %s38, 3
      %p464 = scmp.ne.s32.totalorder %s459, %s461
      %p465 = scmp.eq.s32.totalorder %s38, 0
      %p466 = por %p464, %p465
      %p467 = scmp.ne.s32.totalorder %s459, %s461
      %p468 = scmp.eq.s32.totalorder %s43, 3
      %p469 = por %p467, %p468
      %p470 = scmp.ne.s32.totalorder %s461, %s462
      %p471 = scmp.eq.s32.totalorder %s43, 0
      %p472 = por %p470, %p471
      %p473 = scmp.ne.s32.totalorder %s461, %s462
      %p474 = scmp.eq.s32.totalorder %s44, 3
      %p475 = por %p473, %p474
      %p477 = scmp.ne.s32.totalorder %s462, %s476
      %p478 = scmp.eq.s32.totalorder %s44, 0
      %p479 = por %p477, %p478
      %s481 = sadd.s32 %s480, 1
      %p484 = scmp.eq.s32.totalorder %s38, 3
      %p485 = scmp.ne.s32.totalorder %s480, %s482
      %p486 = scmp.eq.s32.totalorder %s38, 0
      %p487 = por %p485, %p486
      %p488 = scmp.ne.s32.totalorder %s480, %s482
      %p489 = scmp.eq.s32.totalorder %s43, 3
      %p490 = por %p488, %p489
      %p491 = scmp.ne.s32.totalorder %s482, %s483
      %p492 = scmp.eq.s32.totalorder %s43, 0
      %p493 = por %p491, %p492
      %p494 = scmp.ne.s32.totalorder %s482, %s483
      %p495 = scmp.eq.s32.totalorder %s44, 3
      %p496 = por %p494, %p495
      %p498 = scmp.ne.s32.totalorder %s483, %s497
      %p499 = scmp.eq.s32.totalorder %s44, 0
      %p500 = por %p498, %p499
      %s502 = sadd.s32 %s501, 1
      %p505 = scmp.eq.s32.totalorder %s38, 3
      %p506 = scmp.ne.s32.totalorder %s501, %s503
      %p507 = scmp.eq.s32.totalorder %s38, 0
      %p508 = por %p506, %p507
      %p509 = scmp.ne.s32.totalorder %s501, %s503
      %p510 = scmp.eq.s32.totalorder %s43, 3
      %p511 = por %p509, %p510
      %p512 = scmp.ne.s32.totalorder %s503, %s504
      %p513 = scmp.eq.s32.totalorder %s43, 0
      %p514 = por %p512, %p513
      %p515 = scmp.ne.s32.totalorder %s503, %s504
      %p516 = scmp.eq.s32.totalorder %s44, 3
      %p517 = por %p515, %p516
      %p519 = scmp.ne.s32.totalorder %s504, %s518
      %p520 = scmp.eq.s32.totalorder %s44, 0
      %p521 = por %p519, %p520
      %s522 = ssub.s32 %s45, %s57
      %p523 = scmp.eq.s32.totalorder %s522, 0
      %s525 = sadd.s32 %s524, 1
      %s526 = scalar_select %p523, %s524, %s525
      %p529 = pneg %p523
      %p530 = scmp.eq.s32.totalorder %s38, 3
      %p531 = por %p529, %p530
      %p532 = scmp.ne.s32.totalorder %s524, %s527
      %p533 = scmp.eq.s32.totalorder %s38, 0
      %p534 = por %p532, %p533
      %p535 = scmp.ne.s32.totalorder %s524, %s527
      %p536 = scmp.eq.s32.totalorder %s43, 3
      %p537 = por %p535, %p536
      %p538 = scmp.ne.s32.totalorder %s527, %s528
      %p539 = scmp.eq.s32.totalorder %s43, 0
      %p540 = por %p538, %p539
      %p541 = scmp.ne.s32.totalorder %s527, %s528
      %p542 = scmp.eq.s32.totalorder %s44, 3
      %p543 = por %p541, %p542
      %p545 = scmp.ne.s32.totalorder %s528, %s544
      %p546 = scmp.eq.s32.totalorder %s44, 0
      %p547 = por %p545, %p546
      %p548 = scmp.le.s32.totalorder 1, %s38
      %p549 = scmp.lt.s32.totalorder %s38, 5
      %p550 = pnand %p548, %p549
      %p551 = pneg %p550
      // Predicated region
      $region9: #{vanilla_transformer_forward.1} parent=5 // pred_check
        _
      $region10: #{vanilla_transformer_forward.1} parent=5 // pred_check_branch
        %553 = sbr.rel (%p550) target = $region12
      $region11: #{vanilla_transformer_forward.1} parent=5 // pred_region
        %s554 = ssub.s32 %s38, 1
        // Predicated region
        $region13: #{vanilla_transformer_forward.1} parent=11 // pred_check
          %p555 = pneg %p409
        $region14: #{vanilla_transformer_forward.1} parent=11 // pred_check_branch
          %557 = sbr.rel (%p555) target = $region16
        $region15: #{vanilla_transformer_forward.1} parent=11 // pred_region
          %559 = vsyncadd [#allocation10], 0
          %s560 = sshll.u32 %s13, 4
          %s561 = int_to_ptr.hbm [resolvable:$true] %s560
          %s562 = sshll.u32 [#allocation11], 4
          %s563 = int_to_ptr.vmem [resolvable:$true] %s562
          %568 = dma.hbm_to_vmem [thread:$0]  %s561, 2048, %s563, [#allocation10], 128, 128, 8
        $region16: #{vanilla_transformer_forward.1} parent=11 // pred_fallthru
          _
        // Predicated region
        $region17: #{vanilla_transformer_forward.1} parent=11 // pred_check
          %p569 = pneg %p430
        $region18: #{vanilla_transformer_forward.1} parent=11 // pred_check_branch
          %571 = sbr.rel (%p569) target = $region20
        $region19: #{vanilla_transformer_forward.1} parent=11 // pred_region
          _
        $region20: #{vanilla_transformer_forward.1} parent=11 // pred_fallthru
          _
        // Predicated region
        $region21: #{vanilla_transformer_forward.1} parent=11 // pred_check
          %p572 = pneg %p451
        $region22: #{vanilla_transformer_forward.1} parent=11 // pred_check_branch
          %574 = sbr.rel (%p572) target = $region24
        $region23: #{vanilla_transformer_forward.1} parent=11 // pred_region
          %576 = vsyncadd [#allocation13], 0
          %s577 = sshll.u32 %s15, 4
          %s578 = int_to_ptr.hbm [resolvable:$true] %s577
          %s579 = sshll.u32 [#allocation12], 4
          %s580 = int_to_ptr.vmem [resolvable:$true] %s579
          %585 = dma.hbm_to_vmem [thread:$0]  %s578, 2048, %s580, [#allocation13], 128, 128, 8
        $region24: #{vanilla_transformer_forward.1} parent=11 // pred_fallthru
          _
        // Predicated region
        $region25: #{vanilla_transformer_forward.1} parent=11 // pred_check
          %p586 = pneg %p472
        $region26: #{vanilla_transformer_forward.1} parent=11 // pred_check_branch
          %588 = sbr.rel (%p586) target = $region28
        $region27: #{vanilla_transformer_forward.1} parent=11 // pred_region
          _
        $region28: #{vanilla_transformer_forward.1} parent=11 // pred_fallthru
          _
        // Predicated region
        $region29: #{vanilla_transformer_forward.1} parent=11 // pred_check
          %p589 = pneg %p493
        $region30: #{vanilla_transformer_forward.1} parent=11 // pred_check_branch
          %591 = sbr.rel (%p589) target = $region32
        $region31: #{vanilla_transformer_forward.1} parent=11 // pred_region
          %593 = vsyncadd [#allocation13], 0
          %s594 = sshll.u32 %s17, 4
          %s595 = int_to_ptr.hbm [resolvable:$true] %s594
          %s596 = sshll.u32 [#allocation14], 4
          %s597 = int_to_ptr.vmem [resolvable:$true] %s596
          %602 = dma.hbm_to_vmem [thread:$0]  %s595, 2048, %s597, [#allocation13], 128, 128, 8
        $region32: #{vanilla_transformer_forward.1} parent=11 // pred_fallthru
          _
        // Predicated region
        $region33: #{vanilla_transformer_forward.1} parent=11 // pred_check
          %p603 = pneg %p514
        $region34: #{vanilla_transformer_forward.1} parent=11 // pred_check_branch
          %605 = sbr.rel (%p603) target = $region36
        $region35: #{vanilla_transformer_forward.1} parent=11 // pred_region
          _
        $region36: #{vanilla_transformer_forward.1} parent=11 // pred_fallthru
          _
      $region12: #{vanilla_transformer_forward.1} parent=5 // pred_fallthru
        _
      %p606 = scmp.lt.s32.totalorder %s38, 4
      // Predicated region
      $region37: #{vanilla_transformer_forward.1} parent=5 // pred_check
        %p607 = pneg %p606
      $region38: #{vanilla_transformer_forward.1} parent=5 // pred_check_branch
        %609 = sbr.rel (%p607) target = $region40
      $region39: #{vanilla_transformer_forward.1} parent=5 // pred_region
        // Predicated region
        $region41: #{vanilla_transformer_forward.1} parent=39 // pred_check
          %p610 = pneg %p70
        $region42: #{vanilla_transformer_forward.1} parent=39 // pred_check_branch
          %612 = sbr.rel (%p610) target = $region44
        $region43: #{vanilla_transformer_forward.1} parent=39 // pred_region
          %p613 = scmp.lt.s32.totalorder %s45, 1
          %s614 = scalar_select %p613, %s45, 1
          %s615 = smul.addr %s614, 8
          %s616 = scalar_lea.vmem %s0, %s615
        $region44: #{vanilla_transformer_forward.1} parent=39 // pred_fallthru
          _
        // Predicated region
        $region45: #{vanilla_transformer_forward.1} parent=39 // pred_check
          %p617 = pneg %p96
        $region46: #{vanilla_transformer_forward.1} parent=39 // pred_check_branch
          %619 = sbr.rel (%p617) target = $region48
        $region47: #{vanilla_transformer_forward.1} parent=39 // pred_region
          %s620 = sand.u32 %s86, 1
          %s621 = scalar_lea.sflag [#allocation4], %s620
          %s622 = sand.u32 %s86, 1
          %s623 = smul.addr %s622, 384
          %s624 = scalar_lea.vmem [#allocation3], %s623
          %626 = vsyncadd %s621, 0
          %s627 = smul.addr %s46, 48
          %s628 = smul.addr %s627, 8
          %s629 = scalar_lea.hbm %s1, %s628
          %s630 = sshll.u32 %s629, 4
          %s631 = int_to_ptr.hbm [resolvable:$true] %s630
          %s632 = sshll.u32 %s624, 4
          %s633 = int_to_ptr.vmem [resolvable:$true] %s632
          %638 = dma.hbm_to_vmem [thread:$0]  %s631, 6144, %s633, %s621, 384, 384, 24
        $region48: #{vanilla_transformer_forward.1} parent=39 // pred_fallthru
          _
        // Predicated region
        $region49: #{vanilla_transformer_forward.1} parent=39 // pred_check
          %p639 = pneg %p122
        $region50: #{vanilla_transformer_forward.1} parent=39 // pred_check_branch
          %641 = sbr.rel (%p639) target = $region52
        $region51: #{vanilla_transformer_forward.1} parent=39 // pred_region
          %p642 = scmp.lt.s32.totalorder %s46, 1
          %s643 = scalar_select %p642, %s46, 1
          %s644 = smul.addr %s643, 3
          %s645 = scalar_lea.vmem %s2, %s644
        $region52: #{vanilla_transformer_forward.1} parent=39 // pred_fallthru
          _
        // Predicated region
        $region53: #{vanilla_transformer_forward.1} parent=39 // pred_check
          %p646 = pneg %p148
        $region54: #{vanilla_transformer_forward.1} parent=39 // pred_check_branch
          %648 = sbr.rel (%p646) target = $region56
        $region55: #{vanilla_transformer_forward.1} parent=39 // pred_region
          %s649 = sand.u32 %s38, 1
          %s650 = scalar_lea.sflag [#allocation7], %s649
          %s651 = sand.u32 %s138, 1
          %s652 = smul.addr %s651, 128
          %s653 = scalar_lea.vmem [#allocation6], %s652
          %655 = vsyncadd %s650, 0
          %s656 = smul.addr %s46, 16
          %s657 = smul.addr %s656, 8
          %s658 = scalar_lea.hbm %s3, %s657
          %s659 = sshll.u32 %s658, 4
          %s660 = int_to_ptr.hbm [resolvable:$true] %s659
          %s661 = sshll.u32 %s653, 4
          %s662 = int_to_ptr.vmem [resolvable:$true] %s661
          %667 = dma.hbm_to_vmem [thread:$0]  %s660, 2048, %s662, %s650, 128, 128, 8
        $region56: #{vanilla_transformer_forward.1} parent=39 // pred_fallthru
          _
        // Predicated region
        $region57: #{vanilla_transformer_forward.1} parent=39 // pred_check
          %p668 = pneg %p174
        $region58: #{vanilla_transformer_forward.1} parent=39 // pred_check_branch
          %670 = sbr.rel (%p668) target = $region60
        $region59: #{vanilla_transformer_forward.1} parent=39 // pred_region
          %p671 = scmp.lt.s32.totalorder %s46, 1
          %s672 = scalar_select %p671, %s46, 1
          %s673 = scalar_lea.vmem %s4, %s672
        $region60: #{vanilla_transformer_forward.1} parent=39 // pred_fallthru
          _
        // Predicated region
        $region61: #{vanilla_transformer_forward.1} parent=39 // pred_check
          %p674 = pneg %p200
        $region62: #{vanilla_transformer_forward.1} parent=39 // pred_check_branch
          %676 = sbr.rel (%p674) target = $region64
        $region63: #{vanilla_transformer_forward.1} parent=39 // pred_region
          %p677 = scmp.lt.s32.totalorder %s46, 1
          %s678 = scalar_select %p677, %s46, 1
          %s679 = scalar_lea.vmem %s5, %s678
        $region64: #{vanilla_transformer_forward.1} parent=39 // pred_fallthru
          _
        // Predicated region
        $region65: #{vanilla_transformer_forward.1} parent=39 // pred_check
          %p680 = pneg %p226
        $region66: #{vanilla_transformer_forward.1} parent=39 // pred_check_branch
          %682 = sbr.rel (%p680) target = $region68
        $region67: #{vanilla_transformer_forward.1} parent=39 // pred_region
          %p683 = scmp.lt.s32.totalorder %s46, 1
          %s684 = scalar_select %p683, %s46, 1
          %s685 = scalar_lea.vmem %s6, %s684
        $region68: #{vanilla_transformer_forward.1} parent=39 // pred_fallthru
          _
        // Predicated region
        $region69: #{vanilla_transformer_forward.1} parent=39 // pred_check
          %p686 = pneg %p252
        $region70: #{vanilla_transformer_forward.1} parent=39 // pred_check_branch
          %688 = sbr.rel (%p686) target = $region72
        $region71: #{vanilla_transformer_forward.1} parent=39 // pred_region
          %s689 = sand.u32 %s38, 1
          %s690 = scalar_lea.sflag [#allocation7], %s689
          %s691 = sand.u32 %s242, 1
          %s692 = smul.addr %s691, 128
          %s693 = scalar_lea.vmem [#allocation8], %s692
          %695 = vsyncadd %s690, 0
          %s696 = smul.addr %s46, 16
          %s697 = smul.addr %s696, 8
          %s698 = scalar_lea.hbm %s7, %s697
          %s699 = sshll.u32 %s698, 4
          %s700 = int_to_ptr.hbm [resolvable:$true] %s699
          %s701 = sshll.u32 %s693, 4
          %s702 = int_to_ptr.vmem [resolvable:$true] %s701
          %707 = dma.hbm_to_vmem [thread:$0]  %s700, 2048, %s702, %s690, 128, 128, 8
        $region72: #{vanilla_transformer_forward.1} parent=39 // pred_fallthru
          _
        // Predicated region
        $region73: #{vanilla_transformer_forward.1} parent=39 // pred_check
          %p708 = pneg %p278
        $region74: #{vanilla_transformer_forward.1} parent=39 // pred_check_branch
          %710 = sbr.rel (%p708) target = $region76
        $region75: #{vanilla_transformer_forward.1} parent=39 // pred_region
          %p711 = scmp.lt.s32.totalorder %s46, 1
          %s712 = scalar_select %p711, %s46, 1
          %s713 = scalar_lea.vmem %s8, %s712
        $region76: #{vanilla_transformer_forward.1} parent=39 // pred_fallthru
          _
        // Predicated region
        $region77: #{vanilla_transformer_forward.1} parent=39 // pred_check
          %p714 = pneg %p304
        $region78: #{vanilla_transformer_forward.1} parent=39 // pred_check_branch
          %716 = sbr.rel (%p714) target = $region80
        $region79: #{vanilla_transformer_forward.1} parent=39 // pred_region
          %s717 = sand.u32 %s38, 1
          %s718 = scalar_lea.sflag [#allocation10], %s717
          %s719 = sand.u32 %s294, 1
          %s720 = smul.addr %s719, 128
          %s721 = scalar_lea.vmem [#allocation9], %s720
          %723 = vsyncadd %s718, 0
          %s724 = smul.addr %s46, 16
          %s725 = smul.addr %s724, 8
          %s726 = scalar_lea.hbm %s9, %s725
          %s727 = sshll.u32 %s726, 4
          %s728 = int_to_ptr.hbm [resolvable:$true] %s727
          %s729 = sshll.u32 %s721, 4
          %s730 = int_to_ptr.vmem [resolvable:$true] %s729
          %735 = dma.hbm_to_vmem [thread:$0]  %s728, 2048, %s730, %s718, 128, 128, 8
        $region80: #{vanilla_transformer_forward.1} parent=39 // pred_fallthru
          _
        // Predicated region
        $region81: #{vanilla_transformer_forward.1} parent=39 // pred_check
          %p736 = pneg %p330
        $region82: #{vanilla_transformer_forward.1} parent=39 // pred_check_branch
          %738 = sbr.rel (%p736) target = $region84
        $region83: #{vanilla_transformer_forward.1} parent=39 // pred_region
          %p739 = scmp.lt.s32.totalorder %s46, 1
          %s740 = scalar_select %p739, %s46, 1
          %s741 = scalar_lea.vmem %s10, %s740
        $region84: #{vanilla_transformer_forward.1} parent=39 // pred_fallthru
          _
        // Predicated region
        $region85: #{vanilla_transformer_forward.1} parent=39 // pred_check
          %p742 = pneg %p356
        $region86: #{vanilla_transformer_forward.1} parent=39 // pred_check_branch
          %744 = sbr.rel (%p742) target = $region88
        $region87: #{vanilla_transformer_forward.1} parent=39 // pred_region
          %p745 = scmp.lt.s32.totalorder %s46, 1
          %s746 = scalar_select %p745, %s46, 1
          %s747 = scalar_lea.vmem %s11, %s746
        $region88: #{vanilla_transformer_forward.1} parent=39 // pred_fallthru
          _
        // Predicated region
        $region89: #{vanilla_transformer_forward.1} parent=39 // pred_check
          %p748 = pneg %p382
        $region90: #{vanilla_transformer_forward.1} parent=39 // pred_check_branch
          %750 = sbr.rel (%p748) target = $region92
        $region91: #{vanilla_transformer_forward.1} parent=39 // pred_region
          %p751 = scmp.lt.s32.totalorder %s46, 1
          %s752 = scalar_select %p751, %s46, 1
          %s753 = scalar_lea.vmem %s12, %s752
        $region92: #{vanilla_transformer_forward.1} parent=39 // pred_fallthru
          _
      $region40: #{vanilla_transformer_forward.1} parent=5 // pred_fallthru
        _
      %p754 = scmp.le.s32.totalorder 1, %s38
      %p755 = scmp.lt.s32.totalorder %s38, 5
      %p756 = pnand %p754, %p755
      %p757 = pneg %p756
      // Predicated region
      $region93: #{vanilla_transformer_forward.1} parent=5 // pred_check
        _
      $region94: #{vanilla_transformer_forward.1} parent=5 // pred_check_branch
        %759 = sbr.rel (%p756) target = $region96
      $region95: #{vanilla_transformer_forward.1} parent=5 // pred_region
        %s760 = ssub.s32 %s38, 1
        %s761 = sand.u32 %s89, 1
        %s762 = scalar_lea.sflag [#allocation4], %s761
        %s763 = sand.u32 %s89, 1
        %s764 = smul.addr %s763, 384
        %s765 = scalar_lea.vmem [#allocation3], %s764
        // Predicated region
        $region97: #{vanilla_transformer_forward.1} parent=95 // pred_check
          %p766 = pneg %p102
        $region98: #{vanilla_transformer_forward.1} parent=95 // pred_check_branch
          %768 = sbr.rel (%p766) target = $region100
        $region99: #{vanilla_transformer_forward.1} parent=95 // pred_region
          %770 = dma.done %s762, 6144
        $region100: #{vanilla_transformer_forward.1} parent=95 // pred_fallthru
          _
        %s771 = sand.u32 %s43, 1
        %s772 = scalar_lea.sflag [#allocation7], %s771
        %s773 = sand.u32 %s141, 1
        %s774 = smul.addr %s773, 128
        %s775 = scalar_lea.vmem [#allocation6], %s774
        // Predicated region
        $region101: #{vanilla_transformer_forward.1} parent=95 // pred_check
          %p776 = pneg %p154
        $region102: #{vanilla_transformer_forward.1} parent=95 // pred_check_branch
          %778 = sbr.rel (%p776) target = $region104
        $region103: #{vanilla_transformer_forward.1} parent=95 // pred_region
          %780 = dma.done %s772, 2048
        $region104: #{vanilla_transformer_forward.1} parent=95 // pred_fallthru
          _
        %s781 = sand.u32 %s43, 1
        %s782 = scalar_lea.sflag [#allocation7], %s781
        %s783 = sand.u32 %s245, 1
        %s784 = smul.addr %s783, 128
        %s785 = scalar_lea.vmem [#allocation8], %s784
        // Predicated region
        $region105: #{vanilla_transformer_forward.1} parent=95 // pred_check
          %p786 = pneg %p258
        $region106: #{vanilla_transformer_forward.1} parent=95 // pred_check_branch
          %788 = sbr.rel (%p786) target = $region108
        $region107: #{vanilla_transformer_forward.1} parent=95 // pred_region
          %790 = dma.done %s782, 2048
        $region108: #{vanilla_transformer_forward.1} parent=95 // pred_fallthru
          _
        %s791 = sand.u32 %s43, 1
        %s792 = scalar_lea.sflag [#allocation10], %s791
        %s793 = sand.u32 %s297, 1
        %s794 = smul.addr %s793, 128
        %s795 = scalar_lea.vmem [#allocation9], %s794
        // Predicated region
        $region109: #{vanilla_transformer_forward.1} parent=95 // pred_check
          %p796 = pneg %p310
        $region110: #{vanilla_transformer_forward.1} parent=95 // pred_check_branch
          %798 = sbr.rel (%p796) target = $region112
        $region111: #{vanilla_transformer_forward.1} parent=95 // pred_region
          %800 = dma.done %s792, 2048
        $region112: #{vanilla_transformer_forward.1} parent=95 // pred_fallthru
          _
        // Predicated region
        $region113: #{vanilla_transformer_forward.1} parent=95 // pred_check
          %p801 = pneg %p409
        $region114: #{vanilla_transformer_forward.1} parent=95 // pred_check_branch
          %803 = sbr.rel (%p801) target = $region116
        $region115: #{vanilla_transformer_forward.1} parent=95 // pred_region
          %805 = dma.done [#allocation10], 2048
        $region116: #{vanilla_transformer_forward.1} parent=95 // pred_fallthru
          _
        // Predicated region
        $region117: #{vanilla_transformer_forward.1} parent=95 // pred_check
          %p806 = pneg %p451
        $region118: #{vanilla_transformer_forward.1} parent=95 // pred_check_branch
          %808 = sbr.rel (%p806) target = $region120
        $region119: #{vanilla_transformer_forward.1} parent=95 // pred_region
          %810 = dma.done [#allocation13], 2048
        $region120: #{vanilla_transformer_forward.1} parent=95 // pred_fallthru
          _
        // Predicated region
        $region121: #{vanilla_transformer_forward.1} parent=95 // pred_check
          %p811 = pneg %p493
        $region122: #{vanilla_transformer_forward.1} parent=95 // pred_check_branch
          %813 = sbr.rel (%p811) target = $region124
        $region123: #{vanilla_transformer_forward.1} parent=95 // pred_region
          %815 = dma.done [#allocation13], 2048
        $region124: #{vanilla_transformer_forward.1} parent=95 // pred_fallthru
          _
        %p816 = scmp.lt.s32.totalorder %s47, 1
        %s817 = scalar_select %p816, %s47, 1
        %s818 = smul.addr %s817, 8
        %s819 = scalar_lea.vmem %s0, %s818
        %p820 = pneg %p76
        %p821 = pneg %p73
        %s822 = sand.u32 %s89, 1
        %s823 = scalar_lea.sflag [#allocation4], %s822
        %s824 = sand.u32 %s89, 1
        %s825 = smul.addr %s824, 384
        %s826 = scalar_lea.vmem [#allocation3], %s825
        %p827 = pneg %p102
        %p828 = pneg %p99
        %p829 = scmp.lt.s32.totalorder %s48, 1
        %s830 = scalar_select %p829, %s48, 1
        %s831 = smul.addr %s830, 3
        %s832 = scalar_lea.vmem %s2, %s831
        %p833 = pneg %p128
        %p834 = pneg %p125
        %s835 = sand.u32 %s43, 1
        %s836 = scalar_lea.sflag [#allocation7], %s835
        %s837 = sand.u32 %s141, 1
        %s838 = smul.addr %s837, 128
        %s839 = scalar_lea.vmem [#allocation6], %s838
        %p840 = pneg %p154
        %p841 = pneg %p151
        %p842 = scmp.lt.s32.totalorder %s48, 1
        %s843 = scalar_select %p842, %s48, 1
        %s844 = scalar_lea.vmem %s4, %s843
        %p845 = pneg %p180
        %p846 = pneg %p177
        %p847 = scmp.lt.s32.totalorder %s48, 1
        %s848 = scalar_select %p847, %s48, 1
        %s849 = scalar_lea.vmem %s5, %s848
        %p850 = pneg %p206
        %p851 = pneg %p203
        %p852 = scmp.lt.s32.totalorder %s48, 1
        %s853 = scalar_select %p852, %s48, 1
        %s854 = scalar_lea.vmem %s6, %s853
        %p855 = pneg %p232
        %p856 = pneg %p229
        %s857 = sand.u32 %s43, 1
        %s858 = scalar_lea.sflag [#allocation7], %s857
        %s859 = sand.u32 %s245, 1
        %s860 = smul.addr %s859, 128
        %s861 = scalar_lea.vmem [#allocation8], %s860
        %p862 = pneg %p258
        %p863 = pneg %p255
        %p864 = scmp.lt.s32.totalorder %s48, 1
        %s865 = scalar_select %p864, %s48, 1
        %s866 = scalar_lea.vmem %s8, %s865
        %p867 = pneg %p284
        %p868 = pneg %p281
        %s869 = sand.u32 %s43, 1
        %s870 = scalar_lea.sflag [#allocation10], %s869
        %s871 = sand.u32 %s297, 1
        %s872 = smul.addr %s871, 128
        %s873 = scalar_lea.vmem [#allocation9], %s872
        %p874 = pneg %p310
        %p875 = pneg %p307
        %p876 = scmp.lt.s32.totalorder %s48, 1
        %s877 = scalar_select %p876, %s48, 1
        %s878 = scalar_lea.vmem %s10, %s877
        %p879 = pneg %p336
        %p880 = pneg %p333
        %p881 = scmp.lt.s32.totalorder %s48, 1
        %s882 = scalar_select %p881, %s48, 1
        %s883 = scalar_lea.vmem %s11, %s882
        %p884 = pneg %p362
        %p885 = pneg %p359
        %p886 = scmp.lt.s32.totalorder %s48, 1
        %s887 = scalar_select %p886, %s48, 1
        %s888 = scalar_lea.vmem %s12, %s887
        %p889 = pneg %p388
        %p890 = pneg %p385
        %p891 = pneg %p409
        %p892 = pneg %p406
        %p893 = pneg %p430
        %p894 = pneg %p427
        %p895 = pneg %p451
        %p896 = pneg %p448
        %p897 = pneg %p472
        %p898 = pneg %p469
        %p899 = pneg %p493
        %p900 = pneg %p490
        %p901 = pneg %p514
        %p902 = pneg %p511
        %p903 = pneg %p540
        %p904 = pneg %p537
        %s905 = sand.u32 %s527, 1
        %s906 = scalar_lea.sflag [#allocation5], %s905
        %s907 = sand.u32 %s527, 1
        %s908 = scalar_lea.vmem [#allocation15], %s907
        %p909 = scmp.lt.s32.totalorder %s47, 1
        %s910 = scalar_select %p909, %s47, 1
        %s911 = smul.addr %s910, 8
        %s912 = scalar_lea.vmem %s0, %s911
        %p913 = scmp.lt.s32.totalorder %s48, 1
        %s914 = scalar_select %p913, %s48, 1
        %s915 = smul.addr %s914, 3
        %s916 = scalar_lea.vmem %s2, %s915
        %p917 = scmp.lt.s32.totalorder %s48, 1
        %s918 = scalar_select %p917, %s48, 1
        %s919 = scalar_lea.vmem %s4, %s918
        %p920 = scmp.lt.s32.totalorder %s48, 1
        %s921 = scalar_select %p920, %s48, 1
        %s922 = scalar_lea.vmem %s5, %s921
        %p923 = scmp.lt.s32.totalorder %s48, 1
        %s924 = scalar_select %p923, %s48, 1
        %s925 = scalar_lea.vmem %s6, %s924
        %p926 = scmp.lt.s32.totalorder %s48, 1
        %s927 = scalar_select %p926, %s48, 1
        %s928 = scalar_lea.vmem %s8, %s927
        %p929 = scmp.lt.s32.totalorder %s48, 1
        %s930 = scalar_select %p929, %s48, 1
        %s931 = scalar_lea.vmem %s10, %s930
        %p932 = scmp.lt.s32.totalorder %s48, 1
        %s933 = scalar_select %p932, %s48, 1
        %s934 = scalar_lea.vmem %s11, %s933
        %p935 = scmp.lt.s32.totalorder %s48, 1
        %s936 = scalar_select %p935, %s48, 1
        %s937 = scalar_lea.vmem %s12, %s936
        %p938 = scmp.eq.s32.totalorder %s48, 0
        // Predicated region
        $region125: #{vanilla_transformer_forward.1} parent=95 // pred_check
          %p939 = pneg %p938
        $region126: #{vanilla_transformer_forward.1} parent=95 // pred_check_branch
          %941 = sbr.rel (%p939) target = $region128
        $region127: #{vanilla_transformer_forward.1} parent=95 // pred_region
          %v942 = vld [vmem:[%s912] sm:$0xff]
          %943 = vst [vmem:[#allocation2] sm:$0xff] %v942
        $region128: #{vanilla_transformer_forward.1} parent=95 // pred_fallthru
          _
        %v944 = vld [vmem:[#allocation2] sm:$0xff]
        %v945 = vld [vmem:[%s765] sm:$0xff]
        %v946 = vld [vmem:[%s765 + $0x8] sm:$0xff]
        %v947 = vld [vmem:[%s765 + $0x10] sm:$0xff]
        %v948 = vld [vmem:[%s765 + $0x18] sm:$0xff]
        %v949 = vld [vmem:[%s765 + $0x20] sm:$0xff]
        %v950 = vld [vmem:[%s765 + $0x28] sm:$0xff]
        %v951 = vld [vmem:[%s765 + $0x30] sm:$0xff]
        %v952 = vld [vmem:[%s765 + $0x38] sm:$0xff]
        %v953 = vld [vmem:[%s765 + $0x40] sm:$0xff]
        %v954 = vld [vmem:[%s765 + $0x48] sm:$0xff]
        %v955 = vld [vmem:[%s765 + $0x50] sm:$0xff]
        %v956 = vld [vmem:[%s765 + $0x58] sm:$0xff]
        %v957 = vld [vmem:[%s765 + $0x60] sm:$0xff]
        %v958 = vld [vmem:[%s765 + $0x68] sm:$0xff]
        %v959 = vld [vmem:[%s765 + $0x70] sm:$0xff]
        %v960 = vld [vmem:[%s765 + $0x78] sm:$0xff]
        %v961 = vld [vmem:[%s765 + $0x80] sm:$0xff]
        %v962 = vld [vmem:[%s765 + $0x88] sm:$0xff]
        %v963 = vld [vmem:[%s765 + $0x90] sm:$0xff]
        %v964 = vld [vmem:[%s765 + $0x98] sm:$0xff]
        %v965 = vld [vmem:[%s765 + $0xa0] sm:$0xff]
        %v966 = vld [vmem:[%s765 + $0xa8] sm:$0xff]
        %v967 = vld [vmem:[%s765 + $0xb0] sm:$0xff]
        %v968 = vld [vmem:[%s765 + $0xb8] sm:$0xff]
        %v969 = vld [vmem:[%s765 + $0xc0] sm:$0xff]
        %v970 = vld [vmem:[%s765 + $0xc8] sm:$0xff]
        %v971 = vld [vmem:[%s765 + $0xd0] sm:$0xff]
        %v972 = vld [vmem:[%s765 + $0xd8] sm:$0xff]
        %v973 = vld [vmem:[%s765 + $0xe0] sm:$0xff]
        %v974 = vld [vmem:[%s765 + $0xe8] sm:$0xff]
        %v975 = vld [vmem:[%s765 + $0xf0] sm:$0xff]
        %v976 = vld [vmem:[%s765 + $0xf8] sm:$0xff]
        %v977 = vld [vmem:[%s765 + $0x100] sm:$0xff]
        %v978 = vld [vmem:[%s765 + $0x108] sm:$0xff]
        %v979 = vld [vmem:[%s765 + $0x110] sm:$0xff]
        %v980 = vld [vmem:[%s765 + $0x118] sm:$0xff]
        %v981 = vld [vmem:[%s765 + $0x120] sm:$0xff]
        %v982 = vld [vmem:[%s765 + $0x128] sm:$0xff]
        %v983 = vld [vmem:[%s765 + $0x130] sm:$0xff]
        %v984 = vld [vmem:[%s765 + $0x138] sm:$0xff]
        %v985 = vld [vmem:[%s765 + $0x140] sm:$0xff]
        %v986 = vld [vmem:[%s765 + $0x148] sm:$0xff]
        %v987 = vld [vmem:[%s765 + $0x150] sm:$0xff]
        %v988 = vld [vmem:[%s765 + $0x158] sm:$0xff]
        %v989 = vld [vmem:[%s765 + $0x160] sm:$0xff]
        %v990 = vld [vmem:[%s765 + $0x168] sm:$0xff]
        %v991 = vld [vmem:[%s765 + $0x170] sm:$0xff]
        %v992 = vld [vmem:[%s765 + $0x178] sm:$0xff]
        %v993 = vld [vmem:[%s916] sm:$0x7]
        %v995 = vperm.slane %v993, 0
        %v996 = vperm.slane %v993, 1
        %v997 = vperm.slane %v993, 2
        %1001 = vmatpush.msra.mxu0 %v990
        %1002 = vmatpush.msra.mxu0 %v987
        %1003 = vmatpush.msra.mxu0 %v984
        %1004 = vmatpush.msra.mxu0 %v981
        %1005 = vmatpush.msra.mxu0 %v978
        %1006 = vmatpush.msra.mxu0 %v975
        %1007 = vmatpush.msra.mxu0 %v972
        %1008 = vmatpush.msra.mxu0 %v969
        %1009 = vmatpush.msra.mxu0 %v966
        %1010 = vmatpush.msra.mxu0 %v963
        %1011 = vmatpush.msra.mxu0 %v960
        %1012 = vmatpush.msra.mxu0 %v957
        %1013 = vmatpush.msra.mxu0 %v954
        %1014 = vmatpush.msra.mxu0 %v951
        %1015 = vmatpush.msra.mxu0 %v948
        %1016 = vmatpush.msra.mxu0 %v945
        %1017 = vmatmul.f32.gmra.mxu0 %v944
        %v1018 = vpop.f32.mrf.mxu0
        %v1019 = vadd.f32 %v995, %v1018
        %1020 = vdwg.mxu0
        %1021 = vmatpush.msra.mxu0 %v991
        %1022 = vmatpush.msra.mxu0 %v988
        %1023 = vmatpush.msra.mxu0 %v985
        %1024 = vmatpush.msra.mxu0 %v982
        %1025 = vmatpush.msra.mxu0 %v979
        %1026 = vmatpush.msra.mxu0 %v976
        %1027 = vmatpush.msra.mxu0 %v973
        %1028 = vmatpush.msra.mxu0 %v970
        %1029 = vmatpush.msra.mxu0 %v967
        %1030 = vmatpush.msra.mxu0 %v964
        %1031 = vmatpush.msra.mxu0 %v961
        %1032 = vmatpush.msra.mxu0 %v958
        %1033 = vmatpush.msra.mxu0 %v955
        %1034 = vmatpush.msra.mxu0 %v952
        %1035 = vmatpush.msra.mxu0 %v949
        %1036 = vmatpush.msra.mxu0 %v946
        %1037 = vmatmul.f32.gmra.mxu0 %v944
        %v1038 = vpop.f32.mrf.mxu0
        %v1039 = vadd.f32 %v996, %v1038
        %1040 = vdwg.mxu0
        %1041 = vmatpush.msra.mxu0 %v992
        %1042 = vmatpush.msra.mxu0 %v989
        %1043 = vmatpush.msra.mxu0 %v986
        %1044 = vmatpush.msra.mxu0 %v983
        %1045 = vmatpush.msra.mxu0 %v980
        %1046 = vmatpush.msra.mxu0 %v977
        %1047 = vmatpush.msra.mxu0 %v974
        %1048 = vmatpush.msra.mxu0 %v971
        %1049 = vmatpush.msra.mxu0 %v968
        %1050 = vmatpush.msra.mxu0 %v965
        %1051 = vmatpush.msra.mxu0 %v962
        %1052 = vmatpush.msra.mxu0 %v959
        %1053 = vmatpush.msra.mxu0 %v956
        %1054 = vmatpush.msra.mxu0 %v953
        %1055 = vmatpush.msra.mxu0 %v950
        %1056 = vmatpush.msra.mxu0 %v947
        %1057 = vmatmul.f32.gmra.mxu0 %v944
        %v1058 = vpop.f32.mrf.mxu0
        %v1059 = vadd.f32 %v997, %v1058
        %1060 = vdwg.mxu0
        %v1061 = vmul.f32 %v1019, 0.35355338
        %v1062 = vld [vmem:[%s775] sm:$0xff]
        %v1063 = vld [vmem:[%s775 + $0x8] sm:$0xff]
        %v1064 = vld [vmem:[%s775 + $0x10] sm:$0xff]
        %v1065 = vld [vmem:[%s775 + $0x18] sm:$0xff]
        %v1066 = vld [vmem:[%s775 + $0x20] sm:$0xff]
        %v1067 = vld [vmem:[%s775 + $0x28] sm:$0xff]
        %v1068 = vld [vmem:[%s775 + $0x30] sm:$0xff]
        %v1069 = vld [vmem:[%s775 + $0x38] sm:$0xff]
        %v1070 = vld [vmem:[%s775 + $0x40] sm:$0xff]
        %v1071 = vld [vmem:[%s775 + $0x48] sm:$0xff]
        %v1072 = vld [vmem:[%s775 + $0x50] sm:$0xff]
        %v1073 = vld [vmem:[%s775 + $0x58] sm:$0xff]
        %v1074 = vld [vmem:[%s775 + $0x60] sm:$0xff]
        %v1075 = vld [vmem:[%s775 + $0x68] sm:$0xff]
        %v1076 = vld [vmem:[%s775 + $0x70] sm:$0xff]
        %v1077 = vld [vmem:[%s775 + $0x78] sm:$0xff]
        %vm1078 = vcmask 261120
        %v1080 = vsel %vm1078, %v1061, 0
        %v1083 = vsel %vm1078, %v1039, 0
        %1085 = vmatpush.xpose.msra.mxu0 0.0
        %1086 = vmatpush.xpose.msra.mxu0 0.0
        %1087 = vmatpush.xpose.msra.mxu0 0.0
        %1088 = vmatpush.xpose.msra.mxu0 0.0
        %1089 = vmatpush.xpose.msra.mxu0 0.0
        %1090 = vmatpush.xpose.msra.mxu0 0.0
        %1091 = vmatpush.xpose.msra.mxu0 0.0
        %1092 = vmatpush.xpose.msra.mxu0 0.0
        %1093 = vmatpush.xpose.msra.mxu0 0.0
        %1094 = vmatpush.xpose.msra.mxu0 0.0
        %1095 = vmatpush.xpose.msra.mxu0 0.0
        %1096 = vmatpush.xpose.msra.mxu0 0.0
        %1097 = vmatpush.xpose.msra.mxu0 0.0
        %1098 = vmatpush.xpose.msra.mxu0 0.0
        %1099 = vmatpush.xpose.msra.mxu0 0.0
        %1100 = vmatpush.xpose.msra.mxu0 %v1083
        %1101 = vmatmul.f32.gmra.mxu0 %v1080
        %v1102 = vpop.f32.mrf.mxu0
        %v1103 = vadd.f32 0.0, %v1102
        %1104 = vdwg.mxu0
        %vm1105 = vcmask 64512
        %v1106 = vsel %vm1105, %v1103, -inf
        %1107 = vmax.xlane.f32.xlu0 %v1106
        %v1108 = vpop.xlane.xlu0 %1107
        %v1109 = vsub.f32 %v1103, %v1108
        %v1110 = vmul.f32 %v1109, 1.442695
        %v1111 = vpow.pop %v1110
        %v1112 = vsel %vm1105, %v1111, 0.0
        %1113 = vadd.xlane.f32.xlu0 %v1112
        %v1114 = vpop.xlane.xlu0 %1113
        %v1115 = vrcp.pop %v1114
        %v1116 = vmul.f32 %v1111, %v1115
        %v1118 = vsel %vm1105, %v1116, 0
        %1120 = vmatpush.msra.mxu0 0.0
        %1121 = vmatpush.msra.mxu0 0.0
        %1122 = vmatpush.msra.mxu0 0.0
        %1123 = vmatpush.msra.mxu0 0.0
        %1124 = vmatpush.msra.mxu0 0.0
        %1125 = vmatpush.msra.mxu0 0.0
        %1126 = vmatpush.msra.mxu0 0.0
        %1127 = vmatpush.msra.mxu0 0.0
        %1128 = vmatpush.msra.mxu0 0.0
        %1129 = vmatpush.msra.mxu0 0.0
        %1130 = vmatpush.msra.mxu0 0.0
        %1131 = vmatpush.msra.mxu0 0.0
        %1132 = vmatpush.msra.mxu0 0.0
        %1133 = vmatpush.msra.mxu0 0.0
        %1134 = vmatpush.msra.mxu0 0.0
        %1135 = vmatpush.msra.mxu0 %v1059
        %1136 = vmatmul.f32.gmra.mxu0 %v1118
        %v1137 = vpop.f32.mrf.mxu0
        %v1138 = vadd.f32 0.0, %v1137
        %1139 = vdwg.mxu0
        %1140 = vrot.lane.b32.xlu0 %v1061, 96
        %v1141 = vpop.permute.xlu0 %1140
        %1142 = vrot.lane.b32.xlu0 %v1039, 96
        %v1143 = vpop.permute.xlu0 %1142
        %v1144 = vsel %vm1078, %v1141, 0
        %v1146 = vsel %vm1078, %v1143, 0
        %1148 = vmatpush.xpose.msra.mxu0 0.0
        %1149 = vmatpush.xpose.msra.mxu0 0.0
        %1150 = vmatpush.xpose.msra.mxu0 0.0
        %1151 = vmatpush.xpose.msra.mxu0 0.0
        %1152 = vmatpush.xpose.msra.mxu0 0.0
        %1153 = vmatpush.xpose.msra.mxu0 0.0
        %1154 = vmatpush.xpose.msra.mxu0 0.0
        %1155 = vmatpush.xpose.msra.mxu0 0.0
        %1156 = vmatpush.xpose.msra.mxu0 0.0
        %1157 = vmatpush.xpose.msra.mxu0 0.0
        %1158 = vmatpush.xpose.msra.mxu0 0.0
        %1159 = vmatpush.xpose.msra.mxu0 0.0
        %1160 = vmatpush.xpose.msra.mxu0 0.0
        %1161 = vmatpush.xpose.msra.mxu0 0.0
        %1162 = vmatpush.xpose.msra.mxu0 0.0
        %1163 = vmatpush.xpose.msra.mxu0 %v1146
        %1164 = vmatmul.f32.gmra.mxu0 %v1144
        %v1165 = vpop.f32.mrf.mxu0
        %v1166 = vadd.f32 0.0, %v1165
        %1167 = vdwg.mxu0
        %v1168 = vsel %vm1105, %v1166, -inf
        %1169 = vmax.xlane.f32.xlu0 %v1168
        %v1170 = vpop.xlane.xlu0 %1169
        %v1171 = vsub.f32 %v1166, %v1170
        %v1172 = vmul.f32 %v1171, 1.442695
        %v1173 = vpow.pop %v1172
        %v1174 = vsel %vm1105, %v1173, 0.0
        %1175 = vadd.xlane.f32.xlu0 %v1174
        %v1176 = vpop.xlane.xlu0 %1175
        %v1177 = vrcp.pop %v1176
        %v1178 = vmul.f32 %v1173, %v1177
        %1180 = vrot.lane.b32.xlu0 %v1059, 96
        %v1181 = vpop.permute.xlu0 %1180
        %v1184 = vsel %vm1105, %v1178, 0
        %1186 = vmatpush.msra.mxu0 0.0
        %1187 = vmatpush.msra.mxu0 0.0
        %1188 = vmatpush.msra.mxu0 0.0
        %1189 = vmatpush.msra.mxu0 0.0
        %1190 = vmatpush.msra.mxu0 0.0
        %1191 = vmatpush.msra.mxu0 0.0
        %1192 = vmatpush.msra.mxu0 0.0
        %1193 = vmatpush.msra.mxu0 0.0
        %1194 = vmatpush.msra.mxu0 0.0
        %1195 = vmatpush.msra.mxu0 0.0
        %1196 = vmatpush.msra.mxu0 0.0
        %1197 = vmatpush.msra.mxu0 0.0
        %1198 = vmatpush.msra.mxu0 0.0
        %1199 = vmatpush.msra.mxu0 0.0
        %1200 = vmatpush.msra.mxu0 0.0
        %1201 = vmatpush.msra.mxu0 %v1181
        %1202 = vmatmul.f32.gmra.mxu0 %v1184
        %v1203 = vpop.f32.mrf.mxu0
        %v1204 = vadd.f32 0.0, %v1203
        %1205 = vdwg.mxu0
        %v1207 = vsel %vm1078, %v1204, 0
        %1209 = vmatpush.msra.mxu0 0.0
        %1210 = vmatpush.msra.mxu0 0.0
        %1211 = vmatpush.msra.mxu0 0.0
        %1212 = vmatpush.msra.mxu0 0.0
        %1213 = vmatpush.msra.mxu0 0.0
        %1214 = vmatpush.msra.mxu0 0.0
        %1215 = vmatpush.msra.mxu0 0.0
        %1216 = vmatpush.msra.mxu0 0.0
        %1217 = vmatpush.msra.mxu0 0.0
        %1218 = vmatpush.msra.mxu0 0.0
        %1219 = vmatpush.msra.mxu0 0.0
        %1220 = vmatpush.msra.mxu0 0.0
        %1221 = vmatpush.msra.mxu0 %v1069
        %1222 = vmatpush.msra.mxu0 %v1068
        %1223 = vmatpush.msra.mxu0 %v1067
        %1224 = vmatpush.msra.mxu0 %v1066
        %1225 = vmatmul.f32.gmra.mxu0 %v1207
        %v1226 = vpop.f32.mrf.mxu0
        %v1227 = vadd.f32 0.0, %v1226
        %1228 = vdwg.mxu0
        %v1230 = vsel %vm1078, %v1138, 0
        %1232 = vmatpush.msra.mxu0 0.0
        %1233 = vmatpush.msra.mxu0 0.0
        %1234 = vmatpush.msra.mxu0 0.0
        %1235 = vmatpush.msra.mxu0 0.0
        %1236 = vmatpush.msra.mxu0 0.0
        %1237 = vmatpush.msra.mxu0 0.0
        %1238 = vmatpush.msra.mxu0 0.0
        %1239 = vmatpush.msra.mxu0 0.0
        %1240 = vmatpush.msra.mxu0 0.0
        %1241 = vmatpush.msra.mxu0 0.0
        %1242 = vmatpush.msra.mxu0 0.0
        %1243 = vmatpush.msra.mxu0 0.0
        %1244 = vmatpush.msra.mxu0 %v1065
        %1245 = vmatpush.msra.mxu0 %v1064
        %1246 = vmatpush.msra.mxu0 %v1063
        %1247 = vmatpush.msra.mxu0 %v1062
        %1248 = vmatmul.f32.gmra.mxu0 %v1230
        %v1249 = vpop.f32.mrf.mxu0
        %v1250 = vadd.f32 %v1227, %v1249
        %1251 = vdwg.mxu0
        %1252 = vrot.lane.b32.xlu0 %v1061, 64
        %v1253 = vpop.permute.xlu0 %1252
        %1254 = vrot.lane.b32.xlu0 %v1039, 64
        %v1255 = vpop.permute.xlu0 %1254
        %v1256 = vsel %vm1078, %v1253, 0
        %v1258 = vsel %vm1078, %v1255, 0
        %1260 = vmatpush.xpose.msra.mxu0 0.0
        %1261 = vmatpush.xpose.msra.mxu0 0.0
        %1262 = vmatpush.xpose.msra.mxu0 0.0
        %1263 = vmatpush.xpose.msra.mxu0 0.0
        %1264 = vmatpush.xpose.msra.mxu0 0.0
        %1265 = vmatpush.xpose.msra.mxu0 0.0
        %1266 = vmatpush.xpose.msra.mxu0 0.0
        %1267 = vmatpush.xpose.msra.mxu0 0.0
        %1268 = vmatpush.xpose.msra.mxu0 0.0
        %1269 = vmatpush.xpose.msra.mxu0 0.0
        %1270 = vmatpush.xpose.msra.mxu0 0.0
        %1271 = vmatpush.xpose.msra.mxu0 0.0
        %1272 = vmatpush.xpose.msra.mxu0 0.0
        %1273 = vmatpush.xpose.msra.mxu0 0.0
        %1274 = vmatpush.xpose.msra.mxu0 0.0
        %1275 = vmatpush.xpose.msra.mxu0 %v1258
        %1276 = vmatmul.f32.gmra.mxu0 %v1256
        %v1277 = vpop.f32.mrf.mxu0
        %v1278 = vadd.f32 0.0, %v1277
        %1279 = vdwg.mxu0
        %v1280 = vsel %vm1105, %v1278, -inf
        %1281 = vmax.xlane.f32.xlu0 %v1280
        %v1282 = vpop.xlane.xlu0 %1281
        %v1283 = vsub.f32 %v1278, %v1282
        %v1284 = vmul.f32 %v1283, 1.442695
        %v1285 = vpow.pop %v1284
        %v1286 = vsel %vm1105, %v1285, 0.0
        %1287 = vadd.xlane.f32.xlu0 %v1286
        %v1288 = vpop.xlane.xlu0 %1287
        %v1289 = vrcp.pop %v1288
        %v1290 = vmul.f32 %v1285, %v1289
        %1291 = vrot.lane.b32.xlu0 %v1059, 64
        %v1292 = vpop.permute.xlu0 %1291
        %v1295 = vsel %vm1105, %v1290, 0
        %1297 = vmatpush.msra.mxu0 0.0
        %1298 = vmatpush.msra.mxu0 0.0
        %1299 = vmatpush.msra.mxu0 0.0
        %1300 = vmatpush.msra.mxu0 0.0
        %1301 = vmatpush.msra.mxu0 0.0
        %1302 = vmatpush.msra.mxu0 0.0
        %1303 = vmatpush.msra.mxu0 0.0
        %1304 = vmatpush.msra.mxu0 0.0
        %1305 = vmatpush.msra.mxu0 0.0
        %1306 = vmatpush.msra.mxu0 0.0
        %1307 = vmatpush.msra.mxu0 0.0
        %1308 = vmatpush.msra.mxu0 0.0
        %1309 = vmatpush.msra.mxu0 0.0
        %1310 = vmatpush.msra.mxu0 0.0
        %1311 = vmatpush.msra.mxu0 0.0
        %1312 = vmatpush.msra.mxu0 %v1292
        %1313 = vmatmul.f32.gmra.mxu0 %v1295
        %v1314 = vpop.f32.mrf.mxu0
        %v1315 = vadd.f32 0.0, %v1314
        %1316 = vdwg.mxu0
        %v1318 = vsel %vm1078, %v1315, 0
        %1320 = vmatpush.msra.mxu0 0.0
        %1321 = vmatpush.msra.mxu0 0.0
        %1322 = vmatpush.msra.mxu0 0.0
        %1323 = vmatpush.msra.mxu0 0.0
        %1324 = vmatpush.msra.mxu0 0.0
        %1325 = vmatpush.msra.mxu0 0.0
        %1326 = vmatpush.msra.mxu0 0.0
        %1327 = vmatpush.msra.mxu0 0.0
        %1328 = vmatpush.msra.mxu0 0.0
        %1329 = vmatpush.msra.mxu0 0.0
        %1330 = vmatpush.msra.mxu0 0.0
        %1331 = vmatpush.msra.mxu0 0.0
        %1332 = vmatpush.msra.mxu0 %v1073
        %1333 = vmatpush.msra.mxu0 %v1072
        %1334 = vmatpush.msra.mxu0 %v1071
        %1335 = vmatpush.msra.mxu0 %v1070
        %1336 = vmatmul.f32.gmra.mxu0 %v1318
        %v1337 = vpop.f32.mrf.mxu0
        %v1338 = vadd.f32 0.0, %v1337
        %1339 = vdwg.mxu0
        %v1340 = vadd.f32 %v1250, %v1338
        %1341 = vrot.lane.b32.xlu0 %v1061, 32
        %v1342 = vpop.permute.xlu0 %1341
        %1343 = vrot.lane.b32.xlu0 %v1039, 32
        %v1344 = vpop.permute.xlu0 %1343
        %v1345 = vsel %vm1078, %v1342, 0
        %v1347 = vsel %vm1078, %v1344, 0
        %1349 = vmatpush.xpose.msra.mxu0 0.0
        %1350 = vmatpush.xpose.msra.mxu0 0.0
        %1351 = vmatpush.xpose.msra.mxu0 0.0
        %1352 = vmatpush.xpose.msra.mxu0 0.0
        %1353 = vmatpush.xpose.msra.mxu0 0.0
        %1354 = vmatpush.xpose.msra.mxu0 0.0
        %1355 = vmatpush.xpose.msra.mxu0 0.0
        %1356 = vmatpush.xpose.msra.mxu0 0.0
        %1357 = vmatpush.xpose.msra.mxu0 0.0
        %1358 = vmatpush.xpose.msra.mxu0 0.0
        %1359 = vmatpush.xpose.msra.mxu0 0.0
        %1360 = vmatpush.xpose.msra.mxu0 0.0
        %1361 = vmatpush.xpose.msra.mxu0 0.0
        %1362 = vmatpush.xpose.msra.mxu0 0.0
        %1363 = vmatpush.xpose.msra.mxu0 0.0
        %1364 = vmatpush.xpose.msra.mxu0 %v1347
        %1365 = vmatmul.f32.gmra.mxu0 %v1345
        %v1366 = vpop.f32.mrf.mxu0
        %v1367 = vadd.f32 0.0, %v1366
        %1368 = vdwg.mxu0
        %v1369 = vsel %vm1105, %v1367, -inf
        %1370 = vmax.xlane.f32.xlu0 %v1369
        %v1371 = vpop.xlane.xlu0 %1370
        %v1372 = vsub.f32 %v1367, %v1371
        %v1373 = vmul.f32 %v1372, 1.442695
        %v1374 = vpow.pop %v1373
        %v1375 = vsel %vm1105, %v1374, 0.0
        %1376 = vadd.xlane.f32.xlu0 %v1375
        %v1377 = vpop.xlane.xlu0 %1376
        %v1378 = vrcp.pop %v1377
        %v1379 = vmul.f32 %v1374, %v1378
        %1380 = vrot.lane.b32.xlu0 %v1059, 32
        %v1381 = vpop.permute.xlu0 %1380
        %v1384 = vsel %vm1105, %v1379, 0
        %1386 = vmatpush.msra.mxu0 0.0
        %1387 = vmatpush.msra.mxu0 0.0
        %1388 = vmatpush.msra.mxu0 0.0
        %1389 = vmatpush.msra.mxu0 0.0
        %1390 = vmatpush.msra.mxu0 0.0
        %1391 = vmatpush.msra.mxu0 0.0
        %1392 = vmatpush.msra.mxu0 0.0
        %1393 = vmatpush.msra.mxu0 0.0
        %1394 = vmatpush.msra.mxu0 0.0
        %1395 = vmatpush.msra.mxu0 0.0
        %1396 = vmatpush.msra.mxu0 0.0
        %1397 = vmatpush.msra.mxu0 0.0
        %1398 = vmatpush.msra.mxu0 0.0
        %1399 = vmatpush.msra.mxu0 0.0
        %1400 = vmatpush.msra.mxu0 0.0
        %1401 = vmatpush.msra.mxu0 %v1381
        %1402 = vmatmul.f32.gmra.mxu0 %v1384
        %v1403 = vpop.f32.mrf.mxu0
        %v1404 = vadd.f32 0.0, %v1403
        %1405 = vdwg.mxu0
        %v1407 = vsel %vm1078, %v1404, 0
        %1409 = vmatpush.msra.mxu0 0.0
        %1410 = vmatpush.msra.mxu0 0.0
        %1411 = vmatpush.msra.mxu0 0.0
        %1412 = vmatpush.msra.mxu0 0.0
        %1413 = vmatpush.msra.mxu0 0.0
        %1414 = vmatpush.msra.mxu0 0.0
        %1415 = vmatpush.msra.mxu0 0.0
        %1416 = vmatpush.msra.mxu0 0.0
        %1417 = vmatpush.msra.mxu0 0.0
        %1418 = vmatpush.msra.mxu0 0.0
        %1419 = vmatpush.msra.mxu0 0.0
        %1420 = vmatpush.msra.mxu0 0.0
        %1421 = vmatpush.msra.mxu0 %v1077
        %1422 = vmatpush.msra.mxu0 %v1076
        %1423 = vmatpush.msra.mxu0 %v1075
        %1424 = vmatpush.msra.mxu0 %v1074
        %1425 = vmatmul.f32.gmra.mxu0 %v1407
        %v1426 = vpop.f32.mrf.mxu0
        %v1427 = vadd.f32 0.0, %v1426
        %1428 = vdwg.mxu0
        %v1429 = vadd.f32 %v1340, %v1427
        %v1430 = vld [vmem:[%s919] sm:$0x1]
        %v1432 = vperm.slane %v1430, 0
        %v1434 = vadd.f32 %v1429, %v1432
        %v1435 = vadd.f32 %v944, %v1434
        %v1436 = vld [vmem:[%s922] sm:$0x1]
        %v1437 = vld [vmem:[%s925] sm:$0x1]
        %v1438 = vlaneseq
        %v1439 = vand.u32 %v1438, 127
        %vm1440 = vcmp.lt.s32.totalorder %v1439, 32
        %v1441 = vsel %vm1440, 1, 0
        %v1442 = vcvt.s32.f32 %v1441
        %v1443 = vmul.f32 %v1435, %v1442
        %1444 = vadd.xlane.f32.xlu0 %v1443
        %v1445 = vpop.xlane.xlu0 %1444
        %v1446 = vmul.f32 %v1445, 0.03125
        %v1447 = vsub.f32 %v1435, %v1446
        %v1448 = vmul.f32 %v1447, %v1442
        %v1449 = vmul.f32 %v1448, %v1448
        %1450 = vadd.xlane.f32.xlu0 %v1449
        %v1451 = vpop.xlane.xlu0 %1450
        %v1452 = vmul.f32 %v1451, 0.03125
        %v1453 = vadd.f32 %v1452, 1e-05
        %v1454 = vrsqrt.pop %v1453
        %v1455 = vmul.f32 %v1454, %v1453
        %v1456 = vmul.f32 %v1455, %v1454
        %v1457 = vmul.f32 0.5, %v1456
        %v1458 = vsub.f32 1.5, %v1457
        %v1459 = vmul.f32 %v1454, %v1458
        %vm1460 = vweird.f32 %v1453
        %vm1461 = vweird.f32 %v1454
        %vm1462 = vmor %vm1460, %vm1461
        %v1463 = vsel %vm1462, %v1454, %v1459
        %v1464 = vmul.f32 %v1448, %v1463
        %v1466 = vperm.slane %v1436, 0
        %v1468 = vmul.f32 %v1464, %v1466
        %v1470 = vperm.slane %v1437, 0
        %v1472 = vadd.f32 %v1468, %v1470
        %v1473 = vld [vmem:[%s785] sm:$0xff]
        %v1474 = vld [vmem:[%s785 + $0x8] sm:$0xff]
        %v1475 = vld [vmem:[%s785 + $0x10] sm:$0xff]
        %v1476 = vld [vmem:[%s785 + $0x18] sm:$0xff]
        %v1477 = vld [vmem:[%s785 + $0x20] sm:$0xff]
        %v1478 = vld [vmem:[%s785 + $0x28] sm:$0xff]
        %v1479 = vld [vmem:[%s785 + $0x30] sm:$0xff]
        %v1480 = vld [vmem:[%s785 + $0x38] sm:$0xff]
        %v1481 = vld [vmem:[%s785 + $0x40] sm:$0xff]
        %v1482 = vld [vmem:[%s785 + $0x48] sm:$0xff]
        %v1483 = vld [vmem:[%s785 + $0x50] sm:$0xff]
        %v1484 = vld [vmem:[%s785 + $0x58] sm:$0xff]
        %v1485 = vld [vmem:[%s785 + $0x60] sm:$0xff]
        %v1486 = vld [vmem:[%s785 + $0x68] sm:$0xff]
        %v1487 = vld [vmem:[%s785 + $0x70] sm:$0xff]
        %v1488 = vld [vmem:[%s785 + $0x78] sm:$0xff]
        %v1489 = vld [vmem:[%s928] sm:$0x1]
        %v1491 = vperm.slane %v1489, 0
        %1493 = vmatpush.msra.mxu0 %v1488
        %1494 = vmatpush.msra.mxu0 %v1487
        %1495 = vmatpush.msra.mxu0 %v1486
        %1496 = vmatpush.msra.mxu0 %v1485
        %1497 = vmatpush.msra.mxu0 %v1484
        %1498 = vmatpush.msra.mxu0 %v1483
        %1499 = vmatpush.msra.mxu0 %v1482
        %1500 = vmatpush.msra.mxu0 %v1481
        %1501 = vmatpush.msra.mxu0 %v1480
        %1502 = vmatpush.msra.mxu0 %v1479
        %1503 = vmatpush.msra.mxu0 %v1478
        %1504 = vmatpush.msra.mxu0 %v1477
        %1505 = vmatpush.msra.mxu0 %v1476
        %1506 = vmatpush.msra.mxu0 %v1475
        %1507 = vmatpush.msra.mxu0 %v1474
        %1508 = vmatpush.msra.mxu0 %v1473
        %1509 = vmatmul.f32.gmra.mxu0 %v1472
        %v1510 = vpop.f32.mrf.mxu0
        %v1511 = vadd.f32 %v1491, %v1510
        %1512 = vdwg.mxu0
        %v1513 = vmax.f32 %v1511, 0.0
        %v1514 = vld [vmem:[%s795] sm:$0xff]
        %v1515 = vld [vmem:[%s795 + $0x8] sm:$0xff]
        %v1516 = vld [vmem:[%s795 + $0x10] sm:$0xff]
        %v1517 = vld [vmem:[%s795 + $0x18] sm:$0xff]
        %v1518 = vld [vmem:[%s795 + $0x20] sm:$0xff]
        %v1519 = vld [vmem:[%s795 + $0x28] sm:$0xff]
        %v1520 = vld [vmem:[%s795 + $0x30] sm:$0xff]
        %v1521 = vld [vmem:[%s795 + $0x38] sm:$0xff]
        %v1522 = vld [vmem:[%s795 + $0x40] sm:$0xff]
        %v1523 = vld [vmem:[%s795 + $0x48] sm:$0xff]
        %v1524 = vld [vmem:[%s795 + $0x50] sm:$0xff]
        %v1525 = vld [vmem:[%s795 + $0x58] sm:$0xff]
        %v1526 = vld [vmem:[%s795 + $0x60] sm:$0xff]
        %v1527 = vld [vmem:[%s795 + $0x68] sm:$0xff]
        %v1528 = vld [vmem:[%s795 + $0x70] sm:$0xff]
        %v1529 = vld [vmem:[%s795 + $0x78] sm:$0xff]
        %v1530 = vld [vmem:[%s931] sm:$0x1]
        %v1532 = vperm.slane %v1530, 0
        %1534 = vmatpush.msra.mxu0 %v1529
        %1535 = vmatpush.msra.mxu0 %v1528
        %1536 = vmatpush.msra.mxu0 %v1527
        %1537 = vmatpush.msra.mxu0 %v1526
        %1538 = vmatpush.msra.mxu0 %v1525
        %1539 = vmatpush.msra.mxu0 %v1524
        %1540 = vmatpush.msra.mxu0 %v1523
        %1541 = vmatpush.msra.mxu0 %v1522
        %1542 = vmatpush.msra.mxu0 %v1521
        %1543 = vmatpush.msra.mxu0 %v1520
        %1544 = vmatpush.msra.mxu0 %v1519
        %1545 = vmatpush.msra.mxu0 %v1518
        %1546 = vmatpush.msra.mxu0 %v1517
        %1547 = vmatpush.msra.mxu0 %v1516
        %1548 = vmatpush.msra.mxu0 %v1515
        %1549 = vmatpush.msra.mxu0 %v1514
        %1550 = vmatmul.f32.gmra.mxu0 %v1513
        %v1551 = vpop.f32.mrf.mxu0
        %v1552 = vadd.f32 %v1532, %v1551
        %1553 = vdwg.mxu0
        %v1554 = vadd.f32 %v1472, %v1552
        %v1555 = vld [vmem:[%s934] sm:$0x1]
        %v1556 = vld [vmem:[%s937] sm:$0x1]
        %v1557 = vmul.f32 %v1554, %v1442
        %1558 = vadd.xlane.f32.xlu0 %v1557
        %v1559 = vpop.xlane.xlu0 %1558
        %v1560 = vmul.f32 %v1559, 0.03125
        %v1561 = vsub.f32 %v1554, %v1560
        %v1562 = vmul.f32 %v1561, %v1442
        %v1563 = vmul.f32 %v1562, %v1562
        %1564 = vadd.xlane.f32.xlu0 %v1563
        %v1565 = vpop.xlane.xlu0 %1564
        %v1566 = vmul.f32 %v1565, 0.03125
        %v1567 = vadd.f32 %v1566, 1e-05
        %v1568 = vrsqrt.pop %v1567
        %v1569 = vmul.f32 %v1568, %v1567
        %v1570 = vmul.f32 %v1569, %v1568
        %v1571 = vmul.f32 0.5, %v1570
        %v1572 = vsub.f32 1.5, %v1571
        %v1573 = vmul.f32 %v1568, %v1572
        %vm1574 = vweird.f32 %v1567
        %vm1575 = vweird.f32 %v1568
        %vm1576 = vmor %vm1574, %vm1575
        %v1577 = vsel %vm1576, %v1568, %v1573
        %v1578 = vmul.f32 %v1562, %v1577
        %v1580 = vperm.slane %v1555, 0
        %v1582 = vmul.f32 %v1578, %v1580
        %v1584 = vperm.slane %v1556, 0
        %v1586 = vadd.f32 %v1582, %v1584
        %1587 = vst [vmem:[#allocation2] sm:$0xff] %v1586
        %p1588 = scmp.eq.s32.totalorder %s48, 1
        // Predicated region
        $region129: #{vanilla_transformer_forward.1} parent=95 // pred_check
          %p1589 = pneg %p1588
        $region130: #{vanilla_transformer_forward.1} parent=95 // pred_check_branch
          %1591 = sbr.rel (%p1589) target = $region132
        $region131: #{vanilla_transformer_forward.1} parent=95 // pred_region
          %v1592 = vrot.slane %v1586, 4
          %v1593 = vadd.f32 %v1586, %v1592
          %v1594 = vrot.slane %v1593, 2
          %v1595 = vadd.f32 %v1593, %v1594
          %v1596 = vrot.slane %v1595, 1
          %v1597 = vadd.f32 %v1595, %v1596
          %v1598 = vrcp.pop 8.0
          %v1599 = vmul.f32 8.0, %v1598
          %v1600 = vsub.f32 1.0, %v1599
          %v1601 = vmul.f32 %v1598, %v1600
          %v1602 = vadd.f32 %v1598, %v1601
          %vm1603 = vweird.f32 %v1598
          %v1604 = vsel %vm1603, %v1598, %v1602
          %v1605 = vmul.f32 %v1597, %v1604
          %v1606 = vld [vmem:[#allocation11] sm:$0xff]
          %v1607 = vld [vmem:[#allocation11 + $0x8] sm:$0xff]
          %v1608 = vld [vmem:[#allocation11 + $0x10] sm:$0xff]
          %v1609 = vld [vmem:[#allocation11 + $0x18] sm:$0xff]
          %v1610 = vld [vmem:[#allocation11 + $0x20] sm:$0xff]
          %v1611 = vld [vmem:[#allocation11 + $0x28] sm:$0xff]
          %v1612 = vld [vmem:[#allocation11 + $0x30] sm:$0xff]
          %v1613 = vld [vmem:[#allocation11 + $0x38] sm:$0xff]
          %v1614 = vld [vmem:[#allocation11 + $0x40] sm:$0xff]
          %v1615 = vld [vmem:[#allocation11 + $0x48] sm:$0xff]
          %v1616 = vld [vmem:[#allocation11 + $0x50] sm:$0xff]
          %v1617 = vld [vmem:[#allocation11 + $0x58] sm:$0xff]
          %v1618 = vld [vmem:[#allocation11 + $0x60] sm:$0xff]
          %v1619 = vld [vmem:[#allocation11 + $0x68] sm:$0xff]
          %v1620 = vld [vmem:[#allocation11 + $0x70] sm:$0xff]
          %v1621 = vld [vmem:[#allocation11 + $0x78] sm:$0xff]
          %v1622 = vld [vmem:[%s14] sm:$0x1]
          %1623 = vmatpush.msra.mxu0 %v1621
          %1624 = vmatpush.msra.mxu0 %v1620
          %1625 = vmatpush.msra.mxu0 %v1619
          %1626 = vmatpush.msra.mxu0 %v1618
          %1627 = vmatpush.msra.mxu0 %v1617
          %1628 = vmatpush.msra.mxu0 %v1616
          %1629 = vmatpush.msra.mxu0 %v1615
          %1630 = vmatpush.msra.mxu0 %v1614
          %1631 = vmatpush.msra.mxu0 %v1613
          %1632 = vmatpush.msra.mxu0 %v1612
          %1633 = vmatpush.msra.mxu0 %v1611
          %1634 = vmatpush.msra.mxu0 %v1610
          %1635 = vmatpush.msra.mxu0 %v1609
          %1636 = vmatpush.msra.mxu0 %v1608
          %1637 = vmatpush.msra.mxu0 %v1607
          %1638 = vmatpush.msra.mxu0 %v1606
          %1639 = vmatmul.f32.gmra.mxu0 %v1605
          %v1640 = vpop.f32.mrf.mxu0
          %v1641 = vadd.f32 %v1622, %v1640
          %1642 = vdwg.mxu0
          %v1643 = vmax.f32 %v1641, 0.0
          %v1644 = vld [vmem:[#allocation12] sm:$0xff]
          %v1645 = vld [vmem:[#allocation12 + $0x8] sm:$0xff]
          %v1646 = vld [vmem:[#allocation12 + $0x10] sm:$0xff]
          %v1647 = vld [vmem:[#allocation12 + $0x18] sm:$0xff]
          %v1648 = vld [vmem:[#allocation12 + $0x20] sm:$0xff]
          %v1649 = vld [vmem:[#allocation12 + $0x28] sm:$0xff]
          %v1650 = vld [vmem:[#allocation12 + $0x30] sm:$0xff]
          %v1651 = vld [vmem:[#allocation12 + $0x38] sm:$0xff]
          %v1652 = vld [vmem:[#allocation12 + $0x40] sm:$0xff]
          %v1653 = vld [vmem:[#allocation12 + $0x48] sm:$0xff]
          %v1654 = vld [vmem:[#allocation12 + $0x50] sm:$0xff]
          %v1655 = vld [vmem:[#allocation12 + $0x58] sm:$0xff]
          %v1656 = vld [vmem:[#allocation12 + $0x60] sm:$0xff]
          %v1657 = vld [vmem:[#allocation12 + $0x68] sm:$0xff]
          %v1658 = vld [vmem:[#allocation12 + $0x70] sm:$0xff]
          %v1659 = vld [vmem:[#allocation12 + $0x78] sm:$0xff]
          %v1660 = vld [vmem:[%s16] sm:$0x1]
          %1661 = vmatpush.msra.mxu0 %v1659
          %1662 = vmatpush.msra.mxu0 %v1658
          %1663 = vmatpush.msra.mxu0 %v1657
          %1664 = vmatpush.msra.mxu0 %v1656
          %1665 = vmatpush.msra.mxu0 %v1655
          %1666 = vmatpush.msra.mxu0 %v1654
          %1667 = vmatpush.msra.mxu0 %v1653
          %1668 = vmatpush.msra.mxu0 %v1652
          %1669 = vmatpush.msra.mxu0 %v1651
          %1670 = vmatpush.msra.mxu0 %v1650
          %1671 = vmatpush.msra.mxu0 %v1649
          %1672 = vmatpush.msra.mxu0 %v1648
          %1673 = vmatpush.msra.mxu0 %v1647
          %1674 = vmatpush.msra.mxu0 %v1646
          %1675 = vmatpush.msra.mxu0 %v1645
          %1676 = vmatpush.msra.mxu0 %v1644
          %1677 = vmatmul.f32.gmra.mxu0 %v1643
          %v1678 = vpop.f32.mrf.mxu0
          %v1679 = vadd.f32 %v1660, %v1678
          %1680 = vdwg.mxu0
          %v1681 = vmax.f32 %v1679, 0.0
          %v1682 = vld [vmem:[#allocation14] sm:$0xff]
          %v1683 = vld [vmem:[#allocation14 + $0x8] sm:$0xff]
          %v1684 = vld [vmem:[#allocation14 + $0x10] sm:$0xff]
          %v1685 = vld [vmem:[#allocation14 + $0x18] sm:$0xff]
          %v1686 = vld [vmem:[#allocation14 + $0x20] sm:$0xff]
          %v1687 = vld [vmem:[#allocation14 + $0x28] sm:$0xff]
          %v1688 = vld [vmem:[#allocation14 + $0x30] sm:$0xff]
          %v1689 = vld [vmem:[#allocation14 + $0x38] sm:$0xff]
          %v1690 = vld [vmem:[#allocation14 + $0x40] sm:$0xff]
          %v1691 = vld [vmem:[#allocation14 + $0x48] sm:$0xff]
          %v1692 = vld [vmem:[#allocation14 + $0x50] sm:$0xff]
          %v1693 = vld [vmem:[#allocation14 + $0x58] sm:$0xff]
          %v1694 = vld [vmem:[#allocation14 + $0x60] sm:$0xff]
          %v1695 = vld [vmem:[#allocation14 + $0x68] sm:$0xff]
          %v1696 = vld [vmem:[#allocation14 + $0x70] sm:$0xff]
          %v1697 = vld [vmem:[#allocation14 + $0x78] sm:$0xff]
          %v1698 = vld [vmem:[%s18] sm:$0x1]
          %1699 = vmatpush.msra.mxu0 %v1697
          %1700 = vmatpush.msra.mxu0 %v1696
          %1701 = vmatpush.msra.mxu0 %v1695
          %1702 = vmatpush.msra.mxu0 %v1694
          %1703 = vmatpush.msra.mxu0 %v1693
          %1704 = vmatpush.msra.mxu0 %v1692
          %1705 = vmatpush.msra.mxu0 %v1691
          %1706 = vmatpush.msra.mxu0 %v1690
          %1707 = vmatpush.msra.mxu0 %v1689
          %1708 = vmatpush.msra.mxu0 %v1688
          %1709 = vmatpush.msra.mxu0 %v1687
          %1710 = vmatpush.msra.mxu0 %v1686
          %1711 = vmatpush.msra.mxu0 %v1685
          %1712 = vmatpush.msra.mxu0 %v1684
          %1713 = vmatpush.msra.mxu0 %v1683
          %1714 = vmatpush.msra.mxu0 %v1682
          %1715 = vmatmul.f32.gmra.mxu0 %v1681
          %v1716 = vpop.f32.mrf.mxu0
          %v1717 = vadd.f32 %v1698, %v1716
          %1718 = vdwg.mxu0
          %1719 = vst [vmem:[%s908] sm:$0x1] %v1717
        $region132: #{vanilla_transformer_forward.1} parent=95 // pred_fallthru
          _
        %s1720 = sand.u32 %s527, 1
        %s1721 = scalar_lea.sflag [#allocation5], %s1720
        %s1722 = sand.u32 %s527, 1
        %s1723 = scalar_lea.vmem [#allocation15], %s1722
        // Predicated region
        $region133: #{vanilla_transformer_forward.1} parent=95 // pred_check
          %p1724 = pneg %p537
        $region134: #{vanilla_transformer_forward.1} parent=95 // pred_check_branch
          %1726 = sbr.rel (%p1724) target = $region136
        $region135: #{vanilla_transformer_forward.1} parent=95 // pred_region
          %1728 = vsyncadd %s1721, 0
          %s1729 = scalar_lea.hbm %s19, %s47
          %s1731 = sshll.u32 %s1723, 4
          %s1732 = int_to_ptr.vmem [resolvable:$true] %s1731
          %s1733 = sshll.u32 %s1729, 4
          %s1734 = int_to_ptr.hbm [resolvable:$true] %s1733
          %1736 = dma.vmem_to_hbm [thread:$0]  %s1732, 16, %s1734, %s1721
        $region136: #{vanilla_transformer_forward.1} parent=95 // pred_fallthru
          _
      $region96: #{vanilla_transformer_forward.1} parent=5 // pred_fallthru
        _
      %p1737 = scmp.le.s32.totalorder 2, %s38
      // Predicated region
      $region137: #{vanilla_transformer_forward.1} parent=5 // pred_check
        %p1738 = pneg %p1737
      $region138: #{vanilla_transformer_forward.1} parent=5 // pred_check_branch
        %1740 = sbr.rel (%p1738) target = $region140
      $region139: #{vanilla_transformer_forward.1} parent=5 // pred_region
        %s1741 = ssub.s32 %s38, 2
        // Predicated region
        $region141: #{vanilla_transformer_forward.1} parent=139 // pred_check
          %p1742 = pneg %p543
        $region142: #{vanilla_transformer_forward.1} parent=139 // pred_check_branch
          %1744 = sbr.rel (%p1742) target = $region144
        $region143: #{vanilla_transformer_forward.1} parent=139 // pred_region
          %s1745 = sand.u32 %s528, 1
          %s1746 = scalar_lea.sflag [#allocation5], %s1745
          %s1747 = sand.u32 %s528, 1
          %s1748 = scalar_lea.vmem [#allocation15], %s1747
          %1750 = dma.done %s1746, 16
        $region144: #{vanilla_transformer_forward.1} parent=139 // pred_fallthru
          _
      $region140: #{vanilla_transformer_forward.1} parent=5 // pred_fallthru
        _
    $region6: #{vanilla_transformer_forward.1} parent=1 // loop_footer
      %s42 = sadd.s32 1, %s38
    $region7: #{vanilla_transformer_forward.1} parent=1 // loop_footer_branch
      %37 = sbr.rel target = $region3
    $region8: #{vanilla_transformer_forward.1} parent=1 // loop_exit
      _
    %1751 = vsyncpa [#allocation4], 1
    %s1752 = scalar_lea.sflag [#allocation4], 1
    %1753 = vsyncpa %s1752, 1
    %1754 = vsyncpa [#allocation7], 1
    %s1755 = scalar_lea.sflag [#allocation7], 1
    %1756 = vsyncpa %s1755, 1
    %1757 = vsyncpa [#allocation10], 1
    %s1758 = scalar_lea.sflag [#allocation10], 1
    %1759 = vsyncpa %s1758, 1
    %1760 = vsyncpa [#allocation13], 1
    %1761 = vsyncpa [#allocation5], 1
    %s1762 = scalar_lea.sflag [#allocation5], 1
    %1763 = vsyncpa %s1762, 1

</llo_original>
